<compile_context>
chip_gen: v7x
topology: tpu7x:2x2x1
jax: 0.10.0
libtpu: 0.0.40
codegen_flags: <defaults>
</compile_context>

<pallas_src>
from functools import partial

import jax
import jax.numpy as jnp
from jax.experimental import pallas as pl
from jax.experimental.pallas import tpu as pltpu

BN_EPS = 1e-5
_MiB = 1024 * 1024


def _round_up(x, m):
    return (x + m - 1) // m * m


def _vmem_limit_bytes(footprint):
    # Generous headroom above the measured per-tile footprint, but never above
    # 48 MiB so v7x (64 MiB physical VMEM) keeps slack; v5e/v6e are unaffected.
    return int(min(48 * _MiB, max(16 * _MiB, 2 * footprint)))


# ---------------- Pallas kernels ----------------

def _conv_stats_kernel(x_ref, w_ref, y_ref, stats_ref, acc_ref, *,
                       k, h_out, w_out, cin, cp):
    """One (n, d_out) output plane; depth tap kd = program_id(2) (reduction).

    x_ref:     (1, 1, H_pad, W_pad, Cin)   bf16  shifted input plane (d_out + kd)
    w_ref:     (k, k*k, Cin, Cp)           bf16  full weight, VMEM-resident
    y_ref:     (1, 1, H_out*W_out, Cp)     bf16  conv output (written at kd==k-1)
    stats_ref: (1, 1, 8, Cp)               f32   rows 0/1 = per-channel sum / sum_sq
    acc_ref:   (H_out*W_out, Cp)           f32   scratch accumulator
    """
    kd = pl.program_id(2)

    @pl.when(kd == 0)
    def _():
        acc_ref[...] = jnp.zeros_like(acc_ref)

    slab = x_ref[0, 0]                        # (H_pad, W_pad, Cin) bf16
    acc = acc_ref[...]
    hw = h_out * w_out
    for kh in range(k):                       # k*k in-plane taps, unrolled
        for kw in range(k):
            win = slab[kh:kh + h_out, kw:kw + w_out, :].reshape(hw, cin)
            w_t = w_ref[kd, kh * k + kw]      # (Cin, Cp); dynamic leading index
            acc = acc + jnp.dot(win, w_t, preferred_element_type=jnp.float32)
    acc_ref[...] = acc

    @pl.when(kd == k - 1)
    def _():
        y_ref[...] = acc.astype(y_ref.dtype)[None, None]
        # Per-tile BN partials from the f32 accumulator (sublane-padded to 8).
        # TODO(synk): Welford-style (count, mean, M2) merge would be more robust
        # to cancellation when |mean| >> std.
        s1 = jnp.sum(acc, axis=0, keepdims=True)            # (1, Cp)
        s2 = jnp.sum(acc * acc, axis=0, keepdims=True)      # (1, Cp)
        pad = jnp.zeros((6, cp), jnp.float32)
        stats_ref[...] = jnp.concatenate([s1, s2, pad], axis=0)[None, None]


def _bn_relu_kernel(y_ref, scale_ref, shift_ref, o_ref):
    # y: (1, 1, HW, Cp) bf16; scale/shift: (1, Cp) f32 -> folded BN affine + ReLU.
    y = y_ref[...].astype(jnp.float32)
    out = jnp.maximum(y * scale_ref[...] + shift_ref[...], 0.0)
    o_ref[...] = out.astype(o_ref.dtype)


# ---------------- per-block wrapper ----------------

@partial(jax.jit, static_argnums=(4, 5, 6))
def _conv_bn_relu_block(x, weight, gamma, beta, ksize, pad, out_dtype):
    """x: (N, D, H, W, Cin) channels-last; weight: (Cout, Cin, k, k, k)."""
    n, d, h, w, cin = x.shape
    cout = weight.shape[0]
    k = ksize
    d_out = d + 2 * pad - k + 1
    h_out = h + 2 * pad - k + 1
    w_out = w + 2 * pad - k + 1
    hw = h_out * w_out
    h_pad, w_pad = h + 2 * pad, w + 2 * pad
    # TODO(synk): tile the H*W plane for very large spatial extents (VMEM bound).

    cp = _round_up(cout, 128)   # lane-dense stores / aligned MXU N-dim
    # (v6e/v7x: 256-alignment of cp only pays once compute-bound; keep 128.)

    # Zero-pad spatial dims + cast to bf16 (one fused XLA pass; no im2col).
    xp = jnp.pad(x.astype(jnp.bfloat16),
                 ((0, 0), (pad, pad), (pad, pad), (pad, pad), (0, 0)))

    # (Cout, Cin, kd, kh, kw) -> (kd, kh*kw, Cin, Cout) -> pad Cout -> bf16.
    w4 = jnp.transpose(weight, (2, 3, 4, 1, 0)).reshape(k, k * k, cin, cout)
    w4 = jnp.pad(w4, ((0, 0), (0, 0), (0, 0), (0, cp - cout))).astype(jnp.bfloat16)

    gamma_p = jnp.pad(gamma.astype(jnp.float32), (0, cp - cout))
    beta_p = jnp.pad(beta.astype(jnp.float32), (0, cp - cout))

    kernel = partial(_conv_stats_kernel, k=k, h_out=h_out, w_out=w_out,
                     cin=cin, cp=cp)

    # Per-tile VMEM footprint (double-buffered blocks + f32 accumulator).
    x_blk = h_pad * w_pad * cin * 2
    w_blk = k * k * k * cin * cp * 2
    y_blk = hw * cp * 2
    st_blk = 8 * cp * 4
    footprint1 = 2 * x_blk + 2 * w_blk + 2 * y_blk + 2 * st_blk + hw * cp * 4

    # ---- pass 1: in-kernel tap accumulation + per-tile partial BN stats ----
    y, stats = pl.pallas_call(
        kernel,
        out_shape=(jax.ShapeDtypeStruct((n, d_out, hw, cp), jnp.bfloat16),
                   jax.ShapeDtypeStruct((n, d_out, 8, cp), jnp.float32)),
        grid=(n, d_out, k),
        in_specs=[
            pl.BlockSpec((1, 1, h_pad, w_pad, cin),
                         lambda ni, di, kd: (ni, di + kd, 0, 0, 0)),
            pl.BlockSpec((k, k * k, cin, cp),
                         lambda ni, di, kd: (0, 0, 0, 0)),
        ],
        out_specs=(
            pl.BlockSpec((1, 1, hw, cp), lambda ni, di, kd: (ni, di, 0, 0)),
            pl.BlockSpec((1, 1, 8, cp), lambda ni, di, kd: (ni, di, 0, 0)),
        ),
        scratch_shapes=[pltpu.VMEM((hw, cp), jnp.float32)],
        compiler_params=pltpu.CompilerParams(
            dimension_semantics=("parallel", "parallel", "arbitrary"),
            vmem_limit_bytes=_vmem_limit_bytes(footprint1)),
        cost_estimate=pl.CostEstimate(
            flops=2 * n * d_out * hw * (k ** 3) * cin * cp,
            transcendentals=0,
            bytes_accessed=(n * d_out * k * x_blk + w_blk
                            + n * d_out * (y_blk + st_blk))),
    )(xp, w4)

    # ---- tiny per-channel glue: fold train-mode BN into scale/shift ----
    m_total = n * d_out * hw
    s = jnp.sum(stats, axis=(0, 1))                             # (8, cp)
    mean = s[0] / m_total
    var = jnp.maximum(s[1] / m_total - mean * mean, 0.0)        # biased (train) variance
    inv = jax.lax.rsqrt(var + BN_EPS)
    scale = (gamma_p * inv).reshape(1, cp)
    shift = (beta_p - mean * gamma_p * inv).reshape(1, cp)

    footprint2 = 2 * y_blk + 2 * hw * cp * jnp.dtype(out_dtype).itemsize + 4 * cp * 4

    # ---- pass 2: normalize + ReLU over lane-dense tiles (bf16 in) ----
    out4 = pl.pallas_call(
        _bn_relu_kernel,
        out_shape=jax.ShapeDtypeStruct((n, d_out, hw, cp), out_dtype),
        grid=(n, d_out),
        in_specs=[
            pl.BlockSpec((1, 1, hw, cp), lambda ni, di: (ni, di, 0, 0)),
            pl.BlockSpec((1, cp), lambda ni, di: (0, 0)),
            pl.BlockSpec((1, cp), lambda ni, di: (0, 0)),
        ],
        out_specs=pl.BlockSpec((1, 1, hw, cp), lambda ni, di: (ni, di, 0, 0)),
        compiler_params=pltpu.CompilerParams(
            dimension_semantics=("parallel", "parallel"),
            vmem_limit_bytes=_vmem_limit_bytes(footprint2)),
        cost_estimate=pl.CostEstimate(
            flops=3 * n * d_out * hw * cp,
            transcendentals=0,
            bytes_accessed=n * d_out * hw * cp
                           * (2 + jnp.dtype(out_dtype).itemsize)),
    )(y, scale, shift)

    # Channel-padding slice only (no row slice needed; tiling is exact).
    return out4.reshape(n, d_out, h_out, w_out, cp)[..., :cout]


# ---------------- module ----------------

class DoubleConvPallas:
    """Pallas port of DoubleConv: (Conv3d -> BatchNorm3d(train) -> ReLU) x 2."""

    def __init__(self, in_ch, out_ch, stride=1, kernel_size=3, key=None):
        assert stride == 1, "TODO(synk): only stride=1 (the module default) is implemented"
        self.k1 = kernel_size
        self.p1 = int(kernel_size / 2)
        key = jax.random.PRNGKey(42) if key is None else key
        k1, k2, k3, k4 = jax.random.split(key, 4)
        # Deterministic synthetic parameters (shapes match nn.Conv3d / nn.BatchNorm3d).
        self.w1 = 0.1 * jax.random.normal(
            k1, (out_ch, in_ch, kernel_size, kernel_size, kernel_size), jnp.float32)
        self.b1 = 0.05 * jax.random.normal(k2, (out_ch,), jnp.float32)  # cancelled by train-mode BN
        self.g1 = jnp.ones((out_ch,), jnp.float32)
        self.be1 = jnp.zeros((out_ch,), jnp.float32)
        self.w2 = 0.1 * jax.random.normal(k3, (out_ch, out_ch, 3, 3, 3), jnp.float32)
        self.b2 = 0.05 * jax.random.normal(k4, (out_ch,), jnp.float32)  # cancelled by train-mode BN
        self.g2 = jnp.ones((out_ch,), jnp.float32)
        self.be2 = jnp.zeros((out_ch,), jnp.float32)
        # TODO(synk): BatchNorm running_mean / running_var buffers are not updated
        # (forward output matches train mode; module state is not replicated).

    def __call__(self, x_ncdhw):
        # NCDHW -> NDHWC once; stay channels-last (bf16) between the two blocks.
        x = jnp.transpose(x_ncdhw, (0, 2, 3, 4, 1))
        h = _conv_bn_relu_block(x, self.w1, self.g1, self.be1, self.k1, self.p1, jnp.bfloat16)
        h = _conv_bn_relu_block(h, self.w2, self.g2, self.be2, 3, 1, jnp.float32)
        # Back to NCDHW only at the module boundary (PyTorch layout contract).
        return jnp.transpose(h, (0, 4, 1, 2, 3))


if __name__ == "__main__":
    key = jax.random.PRNGKey(0)
    N, C_in, C_out, D, H, W = 2, 4, 8, 8, 8, 8
    x = jax.random.normal(key, (N, C_in, D, H, W), dtype=jnp.float32)

    model = DoubleConvPallas(C_in, C_out)
    out = jax.block_until_ready(model(x))
    assert out.shape == (N, C_out, D, H, W), out.shape
    assert bool(jnp.all(jnp.isfinite(out)))
    print("KERNEL_OK")
</pallas_src>

<mosaic_0001>
module attributes {stable_mosaic.version = 11 : i64} {
  func.func @_conv_stats_kernel(%arg0: i32, %arg1: i32, %arg2: i32, %arg3: memref<1x1x10x10x4xbf16, #tpu.memory_space<vmem>>, %arg4: memref<3x9x4x128xbf16, #tpu.memory_space<vmem>>, %arg5: memref<1x1x64x128xbf16, #tpu.memory_space<vmem>>, %arg6: memref<1x1x8x128xf32, #tpu.memory_space<vmem>>, %arg7: memref<64x128xf32, #tpu.memory_space<vmem>>) attributes {dimension_semantics = [#tpu.dimension_semantics<parallel>, #tpu.dimension_semantics<parallel>, #tpu.dimension_semantics<arbitrary>], iteration_bounds = array<i64: 2, 8, 3>, scalar_prefetch = 0 : i64, scratch_operands = 1 : i64, tpu.core_type = #tpu.core_type<tc>, window_params = [{transform_indices = @transform_0, window_bounds = array<i64: 1, 1, 10, 10, 4>}, {pipeline_mode = #tpu.pipeline_mode<synchronous>, transform_indices = @transform_1, window_bounds = array<i64: 3, 9, 4, 128>}, {transform_indices = @transform_2, window_bounds = array<i64: 1, 1, 64, 128>}, {transform_indices = @transform_3, window_bounds = array<i64: 1, 1, 8, 128>}]} {
    %c0_i32 = arith.constant 0 : i32
    %0 = arith.cmpi eq, %arg2, %c0_i32 : i32
    %1 = arith.extui %0 : i1 to i32
    %c0_i32_0 = arith.constant 0 : i32
    %2 = arith.cmpi ne, %1, %c0_i32_0 : i32
    scf.if %2 {
      %cst_37 = arith.constant 0.000000e+00 : f32
      %73 = vector.broadcast %cst_37 : f32 to vector<64x128xf32>
      %c0_38 = arith.constant 0 : index
      %c0_39 = arith.constant 0 : index
      %74 = vector.load %arg7[%c0_38, %c0_39] : memref<64x128xf32, #tpu.memory_space<vmem>>, vector<64x128xf32>
      tpu.vector_store %arg7[%c0_38, %c0_39], %73 {strides = array<i32>} : memref<64x128xf32, #tpu.memory_space<vmem>>, vector<64x128xf32>,
    } else {
    }
    %c0 = arith.constant 0 : index
    %c0_1 = arith.constant 0 : index
    %c0_2 = arith.constant 0 : index
    %c0_3 = arith.constant 0 : index
    %c0_4 = arith.constant 0 : index
    %3 = vector.load %arg3[%c0, %c0_1, %c0_2, %c0_3, %c0_4] : memref<1x1x10x10x4xbf16, #tpu.memory_space<vmem>>, vector<1x1x10x10x4xbf16>
    %4 = vector.shape_cast %3 : vector<1x1x10x10x4xbf16> to vector<10x10x4xbf16>
    %c0_5 = arith.constant 0 : index
    %c0_6 = arith.constant 0 : index
    %5 = vector.load %arg7[%c0_5, %c0_6] : memref<64x128xf32, #tpu.memory_space<vmem>>, vector<64x128xf32>
    %6 = vector.extract_strided_slice %4 {offsets = [0, 0, 0], sizes = [8, 8, 4], strides = [1, 1, 1]} : vector<10x10x4xbf16> to vector<8x8x4xbf16>
    %7 = vector.shape_cast %6 : vector<8x8x4xbf16> to vector<64x4xbf16>
    %8 = arith.index_cast %arg2 : i32 to index
    %c0_7 = arith.constant 0 : index
    %c0_8 = arith.constant 0 : index
    %c0_9 = arith.constant 0 : index
    %9 = vector.load %arg4[%8, %c0_7, %c0_8, %c0_9] : memref<3x9x4x128xbf16, #tpu.memory_space<vmem>>, vector<1x1x4x128xbf16>
    %10 = vector.shape_cast %9 : vector<1x1x4x128xbf16> to vector<4x128xbf16>
    %cst = arith.constant dense<0.000000e+00> : vector<64x128xf32>
    %11 = tpu.matmul %7, %10, %cst {dimension_numbers = #tpu.dot_dimension_numbers<[1], [0], [0], [1], [0, 0, 1, 1], [], []>} : vector<64x4xbf16>, vector<4x128xbf16>, vector<64x128xf32> -> vector<64x128xf32>
    %12 = arith.addf %5, %11 : vector<64x128xf32>
    %13 = vector.extract_strided_slice %4 {offsets = [0, 1, 0], sizes = [8, 8, 4], strides = [1, 1, 1]} : vector<10x10x4xbf16> to vector<8x8x4xbf16>
    %14 = vector.shape_cast %13 : vector<8x8x4xbf16> to vector<64x4xbf16>
    %15 = arith.index_cast %arg2 : i32 to index
    %c1 = arith.constant 1 : index
    %c0_10 = arith.constant 0 : index
    %c0_11 = arith.constant 0 : index
    %16 = vector.load %arg4[%15, %c1, %c0_10, %c0_11] : memref<3x9x4x128xbf16, #tpu.memory_space<vmem>>, vector<1x1x4x128xbf16>
    %17 = vector.shape_cast %16 : vector<1x1x4x128xbf16> to vector<4x128xbf16>
    %cst_12 = arith.constant dense<0.000000e+00> : vector<64x128xf32>
    %18 = tpu.matmul %14, %17, %cst_12 {dimension_numbers = #tpu.dot_dimension_numbers<[1], [0], [0], [1], [0, 0, 1, 1], [], []>} : vector<64x4xbf16>, vector<4x128xbf16>, vector<64x128xf32> -> vector<64x128xf32>
    %19 = arith.addf %12, %18 : vector<64x128xf32>
    %20 = vector.extract_strided_slice %4 {offsets = [0, 2, 0], sizes = [8, 8, 4], strides = [1, 1, 1]} : vector<10x10x4xbf16> to vector<8x8x4xbf16>
    %21 = vector.shape_cast %20 : vector<8x8x4xbf16> to vector<64x4xbf16>
    %22 = arith.index_cast %arg2 : i32 to index
    %c2 = arith.constant 2 : index
    %c0_13 = arith.constant 0 : index
    %c0_14 = arith.constant 0 : index
    %23 = vector.load %arg4[%22, %c2, %c0_13, %c0_14] : memref<3x9x4x128xbf16, #tpu.memory_space<vmem>>, vector<1x1x4x128xbf16>
    %24 = vector.shape_cast %23 : vector<1x1x4x128xbf16> to vector<4x128xbf16>
    %cst_15 = arith.constant dense<0.000000e+00> : vector<64x128xf32>
    %25 = tpu.matmul %21, %24, %cst_15 {dimension_numbers = #tpu.dot_dimension_numbers<[1], [0], [0], [1], [0, 0, 1, 1], [], []>} : vector<64x4xbf16>, vector<4x128xbf16>, vector<64x128xf32> -> vector<64x128xf32>
    %26 = arith.addf %19, %25 : vector<64x128xf32>
    %27 = vector.extract_strided_slice %4 {offsets = [1, 0, 0], sizes = [8, 8, 4], strides = [1, 1, 1]} : vector<10x10x4xbf16> to vector<8x8x4xbf16>
    %28 = vector.shape_cast %27 : vector<8x8x4xbf16> to vector<64x4xbf16>
    %29 = arith.index_cast %arg2 : i32 to index
    %c3 = arith.constant 3 : index
    %c0_16 = arith.constant 0 : index
    %c0_17 = arith.constant 0 : index
    %30 = vector.load %arg4[%29, %c3, %c0_16, %c0_17] : memref<3x9x4x128xbf16, #tpu.memory_space<vmem>>, vector<1x1x4x128xbf16>
    %31 = vector.shape_cast %30 : vector<1x1x4x128xbf16> to vector<4x128xbf16>
    %cst_18 = arith.constant dense<0.000000e+00> : vector<64x128xf32>
    %32 = tpu.matmul %28, %31, %cst_18 {dimension_numbers = #tpu.dot_dimension_numbers<[1], [0], [0], [1], [0, 0, 1, 1], [], []>} : vector<64x4xbf16>, vector<4x128xbf16>, vector<64x128xf32> -> vector<64x128xf32>
    %33 = arith.addf %26, %32 : vector<64x128xf32>
    %34 = vector.extract_strided_slice %4 {offsets = [1, 1, 0], sizes = [8, 8, 4], strides = [1, 1, 1]} : vector<10x10x4xbf16> to vector<8x8x4xbf16>
    %35 = vector.shape_cast %34 : vector<8x8x4xbf16> to vector<64x4xbf16>
    %36 = arith.index_cast %arg2 : i32 to index
    %c4 = arith.constant 4 : index
    %c0_19 = arith.constant 0 : index
    %c0_20 = arith.constant 0 : index
    %37 = vector.load %arg4[%36, %c4, %c0_19, %c0_20] : memref<3x9x4x128xbf16, #tpu.memory_space<vmem>>, vector<1x1x4x128xbf16>
    %38 = vector.shape_cast %37 : vector<1x1x4x128xbf16> to vector<4x128xbf16>
    %cst_21 = arith.constant dense<0.000000e+00> : vector<64x128xf32>
    %39 = tpu.matmul %35, %38, %cst_21 {dimension_numbers = #tpu.dot_dimension_numbers<[1], [0], [0], [1], [0, 0, 1, 1], [], []>} : vector<64x4xbf16>, vector<4x128xbf16>, vector<64x128xf32> -> vector<64x128xf32>
    %40 = arith.addf %33, %39 : vector<64x128xf32>
    %41 = vector.extract_strided_slice %4 {offsets = [1, 2, 0], sizes = [8, 8, 4], strides = [1, 1, 1]} : vector<10x10x4xbf16> to vector<8x8x4xbf16>
    %42 = vector.shape_cast %41 : vector<8x8x4xbf16> to vector<64x4xbf16>
    %43 = arith.index_cast %arg2 : i32 to index
    %c5 = arith.constant 5 : index
    %c0_22 = arith.constant 0 : index
    %c0_23 = arith.constant 0 : index
    %44 = vector.load %arg4[%43, %c5, %c0_22, %c0_23] : memref<3x9x4x128xbf16, #tpu.memory_space<vmem>>, vector<1x1x4x128xbf16>
    %45 = vector.shape_cast %44 : vector<1x1x4x128xbf16> to vector<4x128xbf16>
    %cst_24 = arith.constant dense<0.000000e+00> : vector<64x128xf32>
    %46 = tpu.matmul %42, %45, %cst_24 {dimension_numbers = #tpu.dot_dimension_numbers<[1], [0], [0], [1], [0, 0, 1, 1], [], []>} : vector<64x4xbf16>, vector<4x128xbf16>, vector<64x128xf32> -> vector<64x128xf32>
    %47 = arith.addf %40, %46 : vector<64x128xf32>
    %48 = vector.extract_strided_slice %4 {offsets = [2, 0, 0], sizes = [8, 8, 4], strides = [1, 1, 1]} : vector<10x10x4xbf16> to vector<8x8x4xbf16>
    %49 = vector.shape_cast %48 : vector<8x8x4xbf16> to vector<64x4xbf16>
    %50 = arith.index_cast %arg2 : i32 to index
    %c6 = arith.constant 6 : index
    %c0_25 = arith.constant 0 : index
    %c0_26 = arith.constant 0 : index
    %51 = vector.load %arg4[%50, %c6, %c0_25, %c0_26] : memref<3x9x4x128xbf16, #tpu.memory_space<vmem>>, vector<1x1x4x128xbf16>
    %52 = vector.shape_cast %51 : vector<1x1x4x128xbf16> to vector<4x128xbf16>
    %cst_27 = arith.constant dense<0.000000e+00> : vector<64x128xf32>
    %53 = tpu.matmul %49, %52, %cst_27 {dimension_numbers = #tpu.dot_dimension_numbers<[1], [0], [0], [1], [0, 0, 1, 1], [], []>} : vector<64x4xbf16>, vector<4x128xbf16>, vector<64x128xf32> -> vector<64x128xf32>
    %54 = arith.addf %47, %53 : vector<64x128xf32>
    %55 = vector.extract_strided_slice %4 {offsets = [2, 1, 0], sizes = [8, 8, 4], strides = [1, 1, 1]} : vector<10x10x4xbf16> to vector<8x8x4xbf16>
    %56 = vector.shape_cast %55 : vector<8x8x4xbf16> to vector<64x4xbf16>
    %57 = arith.index_cast %arg2 : i32 to index
    %c7 = arith.constant 7 : index
    %c0_28 = arith.constant 0 : index
    %c0_29 = arith.constant 0 : index
    %58 = vector.load %arg4[%57, %c7, %c0_28, %c0_29] : memref<3x9x4x128xbf16, #tpu.memory_space<vmem>>, vector<1x1x4x128xbf16>
    %59 = vector.shape_cast %58 : vector<1x1x4x128xbf16> to vector<4x128xbf16>
    %cst_30 = arith.constant dense<0.000000e+00> : vector<64x128xf32>
    %60 = tpu.matmul %56, %59, %cst_30 {dimension_numbers = #tpu.dot_dimension_numbers<[1], [0], [0], [1], [0, 0, 1, 1], [], []>} : vector<64x4xbf16>, vector<4x128xbf16>, vector<64x128xf32> -> vector<64x128xf32>
    %61 = arith.addf %54, %60 : vector<64x128xf32>
    %62 = vector.extract_strided_slice %4 {offsets = [2, 2, 0], sizes = [8, 8, 4], strides = [1, 1, 1]} : vector<10x10x4xbf16> to vector<8x8x4xbf16>
    %63 = vector.shape_cast %62 : vector<8x8x4xbf16> to vector<64x4xbf16>
    %64 = arith.index_cast %arg2 : i32 to index
    %c8 = arith.constant 8 : index
    %c0_31 = arith.constant 0 : index
    %c0_32 = arith.constant 0 : index
    %65 = vector.load %arg4[%64, %c8, %c0_31, %c0_32] : memref<3x9x4x128xbf16, #tpu.memory_space<vmem>>, vector<1x1x4x128xbf16>
    %66 = vector.shape_cast %65 : vector<1x1x4x128xbf16> to vector<4x128xbf16>
    %cst_33 = arith.constant dense<0.000000e+00> : vector<64x128xf32>
    %67 = tpu.matmul %63, %66, %cst_33 {dimension_numbers = #tpu.dot_dimension_numbers<[1], [0], [0], [1], [0, 0, 1, 1], [], []>} : vector<64x4xbf16>, vector<4x128xbf16>, vector<64x128xf32> -> vector<64x128xf32>
    %68 = arith.addf %61, %67 : vector<64x128xf32>
    %c0_34 = arith.constant 0 : index
    %c0_35 = arith.constant 0 : index
    %69 = vector.load %arg7[%c0_34, %c0_35] : memref<64x128xf32, #tpu.memory_space<vmem>>, vector<64x128xf32>
    tpu.vector_store %arg7[%c0_34, %c0_35], %68 {strides = array<i32>} : memref<64x128xf32, #tpu.memory_space<vmem>>, vector<64x128xf32>,
    %c2_i32 = arith.constant 2 : i32
    %70 = arith.cmpi eq, %arg2, %c2_i32 : i32
    %71 = arith.extui %70 : i1 to i32
    %c0_i32_36 = arith.constant 0 : i32
    %72 = arith.cmpi ne, %71, %c0_i32_36 : i32
    scf.if %72 {
      %73 = arith.truncf %68 : vector<64x128xf32> to vector<64x128xbf16>
      %74 = vector.shape_cast %73 : vector<64x128xbf16> to vector<1x1x64x128xbf16>
      %c0_37 = arith.constant 0 : index
      %c0_38 = arith.constant 0 : index
      %c0_39 = arith.constant 0 : index
      %c0_40 = arith.constant 0 : index
      %75 = vector.load %arg5[%c0_37, %c0_38, %c0_39, %c0_40] : memref<1x1x64x128xbf16, #tpu.memory_space<vmem>>, vector<1x1x64x128xbf16>
      tpu.vector_store %arg5[%c0_37, %c0_38, %c0_39, %c0_40], %74 {strides = array<i32>} : memref<1x1x64x128xbf16, #tpu.memory_space<vmem>>, vector<1x1x64x128xbf16>,
      %cst_41 = arith.constant dense<0.000000e+00> : vector<128xf32>
      %76 = vector.multi_reduction <add>, %68, %cst_41 [0] : vector<64x128xf32> to vector<128xf32>
      %77 = vector.shape_cast %76 : vector<128xf32> to vector<1x128xf32>
      %78 = arith.mulf %68, %68 : vector<64x128xf32>
      %cst_42 = arith.constant dense<0.000000e+00> : vector<128xf32>
      %79 = vector.multi_reduction <add>, %78, %cst_42 [0] : vector<64x128xf32> to vector<128xf32>
      %80 = vector.shape_cast %79 : vector<128xf32> to vector<1x128xf32>
      %cst_43 = arith.constant 0.000000e+00 : f32
      %81 = vector.broadcast %cst_43 : f32 to vector<6x128xf32>
      %82 = tpu.concatenate %77, %80, %81 in 0 : vector<1x128xf32>, vector<1x128xf32>, vector<6x128xf32> -> vector<8x128xf32>
      %83 = vector.shape_cast %82 : vector<8x128xf32> to vector<1x1x8x128xf32>
      %c0_44 = arith.constant 0 : index
      %c0_45 = arith.constant 0 : index
      %c0_46 = arith.constant 0 : index
      %c0_47 = arith.constant 0 : index
      %84 = vector.load %arg6[%c0_44, %c0_45, %c0_46, %c0_47] : memref<1x1x8x128xf32, #tpu.memory_space<vmem>>, vector<1x1x8x128xf32>
      tpu.vector_store %arg6[%c0_44, %c0_45, %c0_46, %c0_47], %83 {strides = array<i32>} : memref<1x1x8x128xf32, #tpu.memory_space<vmem>>, vector<1x1x8x128xf32>,
    } else {
    }
    return
  }
  func.func @transform_0(%arg0: i32, %arg1: i32, %arg2: i32) -> (i32, i32, i32, i32, i32) {
    %0 = arith.addi %arg1, %arg2 : i32
    %c0_i32 = arith.constant 0 : i32
    %c0_i32_0 = arith.constant 0 : i32
    %c0_i32_1 = arith.constant 0 : i32
    %c0_i32_2 = arith.constant 0 : i32
    return %arg0, %0, %c0_i32, %c0_i32_0, %c0_i32_1 : i32, i32, i32, i32, i32
  }
  func.func @transform_1(%arg0: i32, %arg1: i32, %arg2: i32) -> (i32, i32, i32, i32) {
    %c0_i32 = arith.constant 0 : i32
    %c0_i32_0 = arith.constant 0 : i32
    %c0_i32_1 = arith.constant 0 : i32
    %c0_i32_2 = arith.constant 0 : i32
    %c0_i32_3 = arith.constant 0 : i32
    return %c0_i32, %c0_i32_0, %c0_i32_1, %c0_i32_2 : i32, i32, i32, i32
  }
  func.func @transform_2(%arg0: i32, %arg1: i32, %arg2: i32) -> (i32, i32, i32, i32) {
    %c0_i32 = arith.constant 0 : i32
    %c0_i32_0 = arith.constant 0 : i32
    %c0_i32_1 = arith.constant 0 : i32
    return %arg0, %arg1, %c0_i32, %c0_i32_0 : i32, i32, i32, i32
  }
  func.func @transform_3(%arg0: i32, %arg1: i32, %arg2: i32) -> (i32, i32, i32, i32) {
    %c0_i32 = arith.constant 0 : i32
    %c0_i32_0 = arith.constant 0 : i32
    %c0_i32_1 = arith.constant 0 : i32
    return %arg0, %arg1, %c0_i32, %c0_i32_0 : i32, i32, i32, i32
  }
}

module attributes {stable_mosaic.version = 11 : i64} {
  func.func @_bn_relu_kernel(%arg0: i32, %arg1: i32, %arg2: memref<1x1x64x128xbf16, #tpu.memory_space<vmem>>, %arg3: memref<1x128xf32, #tpu.memory_space<vmem>>, %arg4: memref<1x128xf32, #tpu.memory_space<vmem>>, %arg5: memref<1x1x64x128xbf16, #tpu.memory_space<vmem>>) attributes {dimension_semantics = [#tpu.dimension_semantics<parallel>, #tpu.dimension_semantics<parallel>], iteration_bounds = array<i64: 2, 8>, scalar_prefetch = 0 : i64, scratch_operands = 0 : i64, tpu.core_type = #tpu.core_type<tc>, window_params = [{transform_indices = @transform_0, window_bounds = array<i64: 1, 1, 64, 128>}, {pipeline_mode = #tpu.pipeline_mode<synchronous>, transform_indices = @transform_1, window_bounds = array<i64: 1, 128>}, {pipeline_mode = #tpu.pipeline_mode<synchronous>, transform_indices = @transform_2, window_bounds = array<i64: 1, 128>}, {transform_indices = @transform_3, window_bounds = array<i64: 1, 1, 64, 128>}]} {
    %c0 = arith.constant 0 : index
    %c0_0 = arith.constant 0 : index
    %c0_1 = arith.constant 0 : index
    %c0_2 = arith.constant 0 : index
    %0 = vector.load %arg2[%c0, %c0_0, %c0_1, %c0_2] : memref<1x1x64x128xbf16, #tpu.memory_space<vmem>>, vector<1x1x64x128xbf16>
    %1 = arith.extf %0 : vector<1x1x64x128xbf16> to vector<1x1x64x128xf32>
    %c0_3 = arith.constant 0 : index
    %c0_4 = arith.constant 0 : index
    %2 = vector.load %arg3[%c0_3, %c0_4] : memref<1x128xf32, #tpu.memory_space<vmem>>, vector<1x128xf32>
    %3 = vector.shape_cast %2 : vector<1x128xf32> to vector<1x1x1x128xf32>
    %4 = vector.broadcast %3 : vector<1x1x1x128xf32> to vector<1x1x64x128xf32>
    %5 = arith.mulf %1, %4 : vector<1x1x64x128xf32>
    %c0_5 = arith.constant 0 : index
    %c0_6 = arith.constant 0 : index
    %6 = vector.load %arg4[%c0_5, %c0_6] : memref<1x128xf32, #tpu.memory_space<vmem>>, vector<1x128xf32>
    %7 = vector.shape_cast %6 : vector<1x128xf32> to vector<1x1x1x128xf32>
    %8 = vector.broadcast %7 : vector<1x1x1x128xf32> to vector<1x1x64x128xf32>
    %9 = arith.addf %5, %8 : vector<1x1x64x128xf32>
    %cst = arith.constant 0.000000e+00 : f32
    %10 = vector.broadcast %cst : f32 to vector<1x1x64x128xf32>
    %11 = arith.maximumf %9, %10 : vector<1x1x64x128xf32>
    %12 = arith.truncf %11 : vector<1x1x64x128xf32> to vector<1x1x64x128xbf16>
    %c0_7 = arith.constant 0 : index
    %c0_8 = arith.constant 0 : index
    %c0_9 = arith.constant 0 : index
    %c0_10 = arith.constant 0 : index
    %13 = vector.load %arg5[%c0_7, %c0_8, %c0_9, %c0_10] : memref<1x1x64x128xbf16, #tpu.memory_space<vmem>>, vector<1x1x64x128xbf16>
    tpu.vector_store %arg5[%c0_7, %c0_8, %c0_9, %c0_10], %12 {strides = array<i32>} : memref<1x1x64x128xbf16, #tpu.memory_space<vmem>>, vector<1x1x64x128xbf16>,
    return
  }
  func.func @transform_0(%arg0: i32, %arg1: i32) -> (i32, i32, i32, i32) {
    %c0_i32 = arith.constant 0 : i32
    %c0_i32_0 = arith.constant 0 : i32
    %c0_i32_1 = arith.constant 0 : i32
    return %arg0, %arg1, %c0_i32, %c0_i32_0 : i32, i32, i32, i32
  }
  func.func @transform_1(%arg0: i32, %arg1: i32) -> (i32, i32) {
    %c0_i32 = arith.constant 0 : i32
    %c0_i32_0 = arith.constant 0 : i32
    %c0_i32_1 = arith.constant 0 : i32
    return %c0_i32, %c0_i32_0 : i32, i32
  }
  func.func @transform_2(%arg0: i32, %arg1: i32) -> (i32, i32) {
    %c0_i32 = arith.constant 0 : i32
    %c0_i32_0 = arith.constant 0 : i32
    %c0_i32_1 = arith.constant 0 : i32
    return %c0_i32, %c0_i32_0 : i32, i32
  }
  func.func @transform_3(%arg0: i32, %arg1: i32) -> (i32, i32, i32, i32) {
    %c0_i32 = arith.constant 0 : i32
    %c0_i32_0 = arith.constant 0 : i32
    %c0_i32_1 = arith.constant 0 : i32
    return %arg0, %arg1, %c0_i32, %c0_i32_0 : i32, i32, i32, i32
  }
}

</mosaic_0001>

<llo_original>
// kernel: _conv_bn_relu_block.3
$region0: #{_conv_bn_relu_block.3}
  #allocation0 [shape = 'u32[]', space=smem, size = 0x4, offset = 0x4, fixed_abs, tag = 'smem constant byte address 0x4 - core index']
  #allocation1 [shape = 'u32[144,128]{1,0:T(1,128)}', space=vmem, size = 0x12000, scoped, tag = 'internal scratch']
  %s0 = inlined_call_operand.vmem [shape: bf16[2,8,64,128], index: 0, kind: input, shape index: {}]
  %s1 = inlined_call_operand.vmem [shape: f32[1,128], index: 1, kind: input, shape index: {}]
  %s2 = inlined_call_operand.vmem [shape: f32[1,128], index: 2, kind: input, shape index: {}]
  %s3 = inlined_call_operand.hbm [shape: bf16[2,8,64,128], index: 3, kind: output, shape index: {}]
  %s4 = sld [smem:[#allocation0]]
  $region45: #{_conv_bn_relu_block.3} parent=0
    _
  %s6 = ssub.s32 1, %s4
  %s7 = scalar_select 0, %s6, %s4
  $region1: #{_conv_bn_relu_block.3} parent=0
    #allocation2 [shape = 'u8[32768]{0}', space=vmem, size = 0x8000, scoped, tag = 'output window, operand 0']
    #allocation3 [shape = 's32[2]{0}', space=sflag, size = 0x8, scoped, tag = 'scoped memory for _conv_bn_relu_block.3']
    %8 = vsyncpa [#allocation3], 0
    %s9 = scalar_lea.sflag [#allocation3], 1
    %10 = vsyncpa %s9, 0
    loop: start=0, step=1, limit=18
    $region2: #{_conv_bn_relu_block.3} parent=1 // loop_pre_header
      _
    $region3: #{_conv_bn_relu_block.3} parent=1 // loop_header
      %s12 = sphi 0, %s16
      %p13 = scmp.ge.s32.totalorder %s12, 18
      %s19 = sphi 0, %s31
      %s20 = sphi 0, %s27
      %s21 = sphi 0, %s19
      %s22 = sphi 0, %s20
      %s23 = sphi 0, %s21
      %s24 = sphi 0, %s22
      %s36 = sphi 0, %s38
      %s39 = sphi 0, %s36
      %s40 = sphi 0, %s39
      %s56 = sphi 0, %s40
      %s60 = sphi 0, %s60
      %s62 = sphi 0, %s60
      %s63 = sphi 0, %s62
      %s77 = sphi 0, %s63
      %s81 = sphi 0, %s81
      %s83 = sphi 0, %s81
      %s84 = sphi 0, %s83
      %s98 = sphi 0, %s84
      %s106 = sphi 0, %s108
      %s109 = sphi 0, %s106
      %s110 = sphi 0, %s109
      %s126 = sphi 0, %s110
    $region4: #{_conv_bn_relu_block.3} parent=1 // loop_header_branch
      %15 = sbr.rel (%p13) target = $region8
    $region5: #{_conv_bn_relu_block.3} parent=1 // loop_body
      %s17 = ssub.s32 %s12, 1
      %s18 = ssub.s32 %s12, 2
      %s25 = sadd.s32 1, %s20
      %p26 = scmp.ge.s32.totalorder %s25, 8
      %s27 = scalar_select %p26, 0, %s25
      %s28 = sadd.s32 1, %s19
      %s29 = scalar_select %p26, %s28, %s19
      %p30 = scmp.ge.s32.totalorder %s29, 2
      %s31 = scalar_select %p30, 0, %s29
      %s32 = ssub.s32 %s19, %s31
      %s33 = ssub.s32 %s20, %s27
      %s34 = sor.u32 %s32, %s33
      %p35 = scmp.eq.s32.totalorder %s34, 0
      %s37 = sadd.s32 %s36, 1
      %s38 = scalar_select %p35, %s36, %s37
      %p41 = pneg %p35
      %p42 = scmp.eq.s32.totalorder %s12, 15
      %p43 = por %p41, %p42
      %p44 = scmp.ne.s32.totalorder %s36, %s39
      %p45 = scmp.eq.s32.totalorder %s12, 0
      %p46 = por %p44, %p45
      %p47 = scmp.ne.s32.totalorder %s36, %s39
      %p48 = scmp.eq.s32.totalorder %s17, 15
      %p49 = por %p47, %p48
      %p50 = scmp.ne.s32.totalorder %s39, %s40
      %p51 = scmp.eq.s32.totalorder %s17, 0
      %p52 = por %p50, %p51
      %p53 = scmp.ne.s32.totalorder %s39, %s40
      %p54 = scmp.eq.s32.totalorder %s18, 15
      %p55 = por %p53, %p54
      %p57 = scmp.ne.s32.totalorder %s40, %s56
      %p58 = scmp.eq.s32.totalorder %s18, 0
      %p59 = por %p57, %p58
      %s61 = sadd.s32 %s60, 1
      %p64 = scmp.eq.s32.totalorder %s12, 15
      %p65 = scmp.ne.s32.totalorder %s60, %s62
      %p66 = scmp.eq.s32.totalorder %s12, 0
      %p67 = por %p65, %p66
      %p68 = scmp.ne.s32.totalorder %s60, %s62
      %p69 = scmp.eq.s32.totalorder %s17, 15
      %p70 = por %p68, %p69
      %p71 = scmp.ne.s32.totalorder %s62, %s63
      %p72 = scmp.eq.s32.totalorder %s17, 0
      %p73 = por %p71, %p72
      %p74 = scmp.ne.s32.totalorder %s62, %s63
      %p75 = scmp.eq.s32.totalorder %s18, 15
      %p76 = por %p74, %p75
      %p78 = scmp.ne.s32.totalorder %s63, %s77
      %p79 = scmp.eq.s32.totalorder %s18, 0
      %p80 = por %p78, %p79
      %s82 = sadd.s32 %s81, 1
      %p85 = scmp.eq.s32.totalorder %s12, 15
      %p86 = scmp.ne.s32.totalorder %s81, %s83
      %p87 = scmp.eq.s32.totalorder %s12, 0
      %p88 = por %p86, %p87
      %p89 = scmp.ne.s32.totalorder %s81, %s83
      %p90 = scmp.eq.s32.totalorder %s17, 15
      %p91 = por %p89, %p90
      %p92 = scmp.ne.s32.totalorder %s83, %s84
      %p93 = scmp.eq.s32.totalorder %s17, 0
      %p94 = por %p92, %p93
      %p95 = scmp.ne.s32.totalorder %s83, %s84
      %p96 = scmp.eq.s32.totalorder %s18, 15
      %p97 = por %p95, %p96
      %p99 = scmp.ne.s32.totalorder %s84, %s98
      %p100 = scmp.eq.s32.totalorder %s18, 0
      %p101 = por %p99, %p100
      %s102 = ssub.s32 %s19, %s31
      %s103 = ssub.s32 %s20, %s27
      %s104 = sor.u32 %s102, %s103
      %p105 = scmp.eq.s32.totalorder %s104, 0
      %s107 = sadd.s32 %s106, 1
      %s108 = scalar_select %p105, %s106, %s107
      %p111 = pneg %p105
      %p112 = scmp.eq.s32.totalorder %s12, 15
      %p113 = por %p111, %p112
      %p114 = scmp.ne.s32.totalorder %s106, %s109
      %p115 = scmp.eq.s32.totalorder %s12, 0
      %p116 = por %p114, %p115
      %p117 = scmp.ne.s32.totalorder %s106, %s109
      %p118 = scmp.eq.s32.totalorder %s17, 15
      %p119 = por %p117, %p118
      %p120 = scmp.ne.s32.totalorder %s109, %s110
      %p121 = scmp.eq.s32.totalorder %s17, 0
      %p122 = por %p120, %p121
      %p123 = scmp.ne.s32.totalorder %s109, %s110
      %p124 = scmp.eq.s32.totalorder %s18, 15
      %p125 = por %p123, %p124
      %p127 = scmp.ne.s32.totalorder %s110, %s126
      %p128 = scmp.eq.s32.totalorder %s18, 0
      %p129 = por %p127, %p128
      %p130 = scmp.le.s32.totalorder 1, %s12
      %p131 = scmp.lt.s32.totalorder %s12, 17
      %p132 = pnand %p130, %p131
      %p133 = pneg %p132
      // Predicated region
      $region9: #{_conv_bn_relu_block.3} parent=5 // pred_check
        _
      $region10: #{_conv_bn_relu_block.3} parent=5 // pred_check_branch
        %135 = sbr.rel (%p132) target = $region12
      $region11: #{_conv_bn_relu_block.3} parent=5 // pred_region
        %s136 = ssub.s32 %s12, 1
        // Predicated region
        $region13: #{_conv_bn_relu_block.3} parent=11 // pred_check
          %p137 = pneg %p73
        $region14: #{_conv_bn_relu_block.3} parent=11 // pred_check_branch
          %139 = sbr.rel (%p137) target = $region16
        $region15: #{_conv_bn_relu_block.3} parent=11 // pred_region
          _
        $region16: #{_conv_bn_relu_block.3} parent=11 // pred_fallthru
          _
        // Predicated region
        $region17: #{_conv_bn_relu_block.3} parent=11 // pred_check
          %p140 = pneg %p94
        $region18: #{_conv_bn_relu_block.3} parent=11 // pred_check_branch
          %142 = sbr.rel (%p140) target = $region20
        $region19: #{_conv_bn_relu_block.3} parent=11 // pred_region
          _
        $region20: #{_conv_bn_relu_block.3} parent=11 // pred_fallthru
          _
      $region12: #{_conv_bn_relu_block.3} parent=5 // pred_fallthru
        _
      %p143 = scmp.lt.s32.totalorder %s12, 16
      // Predicated region
      $region21: #{_conv_bn_relu_block.3} parent=5 // pred_check
        %p144 = pneg %p143
      $region22: #{_conv_bn_relu_block.3} parent=5 // pred_check_branch
        %146 = sbr.rel (%p144) target = $region24
      $region23: #{_conv_bn_relu_block.3} parent=5 // pred_region
        // Predicated region
        $region25: #{_conv_bn_relu_block.3} parent=23 // pred_check
          %p147 = pneg %p46
        $region26: #{_conv_bn_relu_block.3} parent=23 // pred_check_branch
          %149 = sbr.rel (%p147) target = $region28
        $region27: #{_conv_bn_relu_block.3} parent=23 // pred_region
          %p150 = scmp.lt.s32.totalorder %s19, 1
          %s151 = scalar_select %p150, %s19, 1
          %p152 = scmp.lt.s32.totalorder %s20, 7
          %s153 = scalar_select %p152, %s20, 7
          %s154 = smul.addr %s153, 8
          %s155 = smul.addr %s151, 64
          %s156 = sadd.s32 %s154, %s155
          %s157 = smul.addr %s156, 4
          %s158 = scalar_lea.vmem %s0, %s157
        $region28: #{_conv_bn_relu_block.3} parent=23 // pred_fallthru
          _
      $region24: #{_conv_bn_relu_block.3} parent=5 // pred_fallthru
        _
      %p159 = scmp.le.s32.totalorder 1, %s12
      %p160 = scmp.lt.s32.totalorder %s12, 17
      %p161 = pnand %p159, %p160
      %p162 = pneg %p161
      // Predicated region
      $region29: #{_conv_bn_relu_block.3} parent=5 // pred_check
        _
      $region30: #{_conv_bn_relu_block.3} parent=5 // pred_check_branch
        %164 = sbr.rel (%p161) target = $region32
      $region31: #{_conv_bn_relu_block.3} parent=5 // pred_region
        %s165 = ssub.s32 %s12, 1
        %p166 = scmp.lt.s32.totalorder %s21, 1
        %s167 = scalar_select %p166, %s21, 1
        %p168 = scmp.lt.s32.totalorder %s22, 7
        %s169 = scalar_select %p168, %s22, 7
        %s170 = smul.addr %s169, 8
        %s171 = smul.addr %s167, 64
        %s172 = sadd.s32 %s170, %s171
        %s173 = smul.addr %s172, 4
        %s174 = scalar_lea.vmem %s0, %s173
        %p175 = pneg %p52
        %p176 = pneg %p49
        %p177 = pneg %p73
        %p178 = pneg %p70
        %p179 = pneg %p94
        %p180 = pneg %p91
        %p181 = pneg %p122
        %p182 = pneg %p119
        %s183 = sand.u32 %s109, 1
        %s184 = scalar_lea.sflag [#allocation3], %s183
        %s185 = sand.u32 %s109, 1
        %s186 = smul.addr %s185, 32
        %s187 = scalar_lea.vmem [#allocation2], %s186
        %p188 = scmp.lt.s32.totalorder %s21, 1
        %s189 = scalar_select %p188, %s21, 1
        %p190 = scmp.lt.s32.totalorder %s22, 7
        %s191 = scalar_select %p190, %s22, 7
        %s192 = smul.addr %s191, 8
        %s193 = smul.addr %s189, 64
        %s194 = sadd.s32 %s192, %s193
        %s195 = smul.addr %s194, 4
        %s196 = scalar_lea.vmem %s0, %s195
        %v197 = vld [vmem:[%s196] sm:$0xf]
        %v198 = vld [vmem:[%s196 + $0x4] sm:$0xf]
        %v199 = vld [vmem:[%s196 + $0x8] sm:$0xf]
        %v200 = vld [vmem:[%s196 + $0xc] sm:$0xf]
        %v201 = vld [vmem:[%s196 + $0x10] sm:$0xf]
        %v202 = vld [vmem:[%s196 + $0x14] sm:$0xf]
        %v203 = vld [vmem:[%s196 + $0x18] sm:$0xf]
        %v204 = vld [vmem:[%s196 + $0x1c] sm:$0xf]
        %v205 = vunpack.c.l.bf16 %v197
        %v206 = vunpack.c.l.bf16 %v198
        %v207 = vunpack.c.l.bf16 %v199
        %v208 = vunpack.c.l.bf16 %v200
        %v209 = vunpack.c.l.bf16 %v201
        %v210 = vunpack.c.l.bf16 %v202
        %v211 = vunpack.c.l.bf16 %v203
        %v212 = vunpack.c.l.bf16 %v204
        %v213 = vld [vmem:[%s1] sm:$0x1]
        %v215 = vlaneseq
        %v216 = vshrl.u32 %v215, 7
        %v217 = vsub.s32 0, %v216
        %v218 = vrot.slane %v213, %v217
        %v220 = vmul.f32 %v205, %v218
        %v221 = vmul.f32 %v206, %v218
        %v222 = vmul.f32 %v207, %v218
        %v223 = vmul.f32 %v208, %v218
        %v224 = vmul.f32 %v209, %v218
        %v225 = vmul.f32 %v210, %v218
        %v226 = vmul.f32 %v211, %v218
        %v227 = vmul.f32 %v212, %v218
        %v228 = vld [vmem:[%s2] sm:$0x1]
        %v230 = vlaneseq
        %v231 = vshrl.u32 %v230, 7
        %v232 = vsub.s32 0, %v231
        %v233 = vrot.slane %v228, %v232
        %v235 = vadd.f32 %v220, %v233
        %v236 = vadd.f32 %v221, %v233
        %v237 = vadd.f32 %v222, %v233
        %v238 = vadd.f32 %v223, %v233
        %v239 = vadd.f32 %v224, %v233
        %v240 = vadd.f32 %v225, %v233
        %v241 = vadd.f32 %v226, %v233
        %v242 = vadd.f32 %v227, %v233
        %v243 = vmax.f32 %v235, 0.0
        %v244 = vmax.f32 %v236, 0.0
        %v245 = vmax.f32 %v237, 0.0
        %v246 = vmax.f32 %v238, 0.0
        %v247 = vmax.f32 %v239, 0.0
        %v248 = vmax.f32 %v240, 0.0
        %v249 = vmax.f32 %v241, 0.0
        %v250 = vmax.f32 %v242, 0.0
        %v251 = vpack.c.bf16 %v244, %v243
        %v252 = vpack.c.bf16 %v246, %v245
        %v253 = vpack.c.bf16 %v248, %v247
        %v254 = vpack.c.bf16 %v250, %v249
        %v259 = vunpack.c.l.b16 %v251
        %v260 = vunpack.c.h.b16 %v251
        %v261 = vunpack.c.l.b16 %v252
        %v262 = vunpack.c.h.b16 %v252
        %v263 = vunpack.c.l.b16 %v253
        %v264 = vunpack.c.h.b16 %v253
        %v265 = vunpack.c.l.b16 %v254
        %v266 = vunpack.c.h.b16 %v254
        %v267 = vpack.c.b16 %v259, %v259
        %v268 = vpack.c.b16 %v260, %v260
        %v269 = vpack.c.b16 %v261, %v261
        %v270 = vpack.c.b16 %v262, %v262
        %v271 = vpack.c.b16 %v263, %v263
        %v272 = vpack.c.b16 %v264, %v264
        %v273 = vpack.c.b16 %v265, %v265
        %v274 = vpack.c.b16 %v266, %v266
        %283 = vst [vmem:[%s187] sm:$0xf] %v267
        %284 = vst [vmem:[%s187 + $0x4] sm:$0xf] %v268
        %285 = vst [vmem:[%s187 + $0x8] sm:$0xf] %v269
        %286 = vst [vmem:[%s187 + $0xc] sm:$0xf] %v270
        %287 = vst [vmem:[%s187 + $0x10] sm:$0xf] %v271
        %288 = vst [vmem:[%s187 + $0x14] sm:$0xf] %v272
        %289 = vst [vmem:[%s187 + $0x18] sm:$0xf] %v273
        %290 = vst [vmem:[%s187 + $0x1c] sm:$0xf] %v274
        %s291 = sand.u32 %s109, 1
        %s292 = scalar_lea.sflag [#allocation3], %s291
        %s293 = sand.u32 %s109, 1
        %s294 = smul.addr %s293, 32
        %s295 = scalar_lea.vmem [#allocation2], %s294
        // Predicated region
        $region33: #{_conv_bn_relu_block.3} parent=31 // pred_check
          %p296 = pneg %p119
        $region34: #{_conv_bn_relu_block.3} parent=31 // pred_check_branch
          %298 = sbr.rel (%p296) target = $region36
        $region35: #{_conv_bn_relu_block.3} parent=31 // pred_region
          %s300 = ssub.s32 512, 512
          %301 = vsyncadd %s292, %s300
          %s302 = smul.addr %s22, 8
          %s303 = smul.addr %s21, 64
          %s304 = sadd.s32 %s302, %s303
          %s305 = smul.addr %s304, 64
          %s306 = scalar_lea.hbm %s3, %s305
          %s307 = sshll.u32 %s295, 4
          %s308 = int_to_ptr.vmem [resolvable:$true] %s307
          %313 = dma.vmem_to_hbm [thread:$0]  %s308, 512, %s306, %s292, 64, 64, 4
        $region36: #{_conv_bn_relu_block.3} parent=31 // pred_fallthru
          _
      $region32: #{_conv_bn_relu_block.3} parent=5 // pred_fallthru
        _
      %p314 = scmp.le.s32.totalorder 2, %s12
      // Predicated region
      $region37: #{_conv_bn_relu_block.3} parent=5 // pred_check
        %p315 = pneg %p314
      $region38: #{_conv_bn_relu_block.3} parent=5 // pred_check_branch
        %317 = sbr.rel (%p315) target = $region40
      $region39: #{_conv_bn_relu_block.3} parent=5 // pred_region
        %s318 = ssub.s32 %s12, 2
        // Predicated region
        $region41: #{_conv_bn_relu_block.3} parent=39 // pred_check
          %p319 = pneg %p125
        $region42: #{_conv_bn_relu_block.3} parent=39 // pred_check_branch
          %321 = sbr.rel (%p319) target = $region44
        $region43: #{_conv_bn_relu_block.3} parent=39 // pred_region
          %s322 = sand.u32 %s110, 1
          %s323 = scalar_lea.sflag [#allocation3], %s322
          %s324 = sand.u32 %s110, 1
          %s325 = smul.addr %s324, 32
          %s326 = scalar_lea.vmem [#allocation2], %s325
          %327 = dma.done %s323, 512
        $region44: #{_conv_bn_relu_block.3} parent=39 // pred_fallthru
          _
      $region40: #{_conv_bn_relu_block.3} parent=5 // pred_fallthru
        _
    $region6: #{_conv_bn_relu_block.3} parent=1 // loop_footer
      %s16 = sadd.s32 1, %s12
    $region7: #{_conv_bn_relu_block.3} parent=1 // loop_footer_branch
      %11 = sbr.rel target = $region3
    $region8: #{_conv_bn_relu_block.3} parent=1 // loop_exit
      _
    %328 = vsyncpa [#allocation3], 1
    %s329 = scalar_lea.sflag [#allocation3], 1
    %330 = vsyncpa %s329, 1

// kernel: _conv_bn_relu_block.2
$region0: #{_conv_bn_relu_block.2}
  #allocation0 [shape = 'u32[]', space=smem, size = 0x4, offset = 0x4, fixed_abs, tag = 'smem constant byte address 0x4 - core index']
  #allocation1 [shape = 'u32[144,128]{1,0:T(1,128)}', space=vmem, size = 0x12000, scoped, tag = 'internal scratch']
  #allocation2 [shape = 'f32[64,128]{1,0:T(8,128)}', space=vmem, size = 0x8000, scoped, tag = 'scratch operand']
  %s0 = inlined_call_operand.vmem [shape: bf16[2,10,10,10,4], index: 0, kind: input, shape index: {}]
  %s1 = inlined_call_operand.vmem [shape: bf16[3,9,4,128], index: 1, kind: input, shape index: {}]
  %s2 = inlined_call_operand.vmem [shape: bf16[2,8,64,128], index: 2, kind: output, shape index: {0}]
  %s3 = inlined_call_operand.vmem [shape: f32[2,8,8,128], index: 3, kind: output, shape index: {1}]
  %4 = xla_tuple %s2, %s3
  %s5 = sld [smem:[#allocation0]]
  $region57: #{_conv_bn_relu_block.2} parent=0
    _
  %s7 = ssub.s32 1, %s5
  %s8 = scalar_select 0, %s7, %s5
  loop: start=0, step=1, limit=50
  $region2: #{_conv_bn_relu_block.2} parent=0 // loop_pre_header
    _
  $region3: #{_conv_bn_relu_block.2} parent=0 // loop_header
    %s10 = sphi 0, %s14
    %p11 = scmp.ge.s32.totalorder %s10, 50
    %s17 = sphi 0, %s36
    %s18 = sphi 0, %s32
    %s19 = sphi 0, %s28
    %s20 = sphi 0, %s17
    %s21 = sphi 0, %s18
    %s22 = sphi 0, %s19
    %s23 = sphi 0, %s20
    %s24 = sphi 0, %s21
    %s25 = sphi 0, %s22
    %s43 = sphi 0, %s45
    %s46 = sphi 0, %s43
    %s47 = sphi 0, %s46
    %s63 = sphi 0, %s47
    %s67 = sphi 0, %s67
    %s69 = sphi 0, %s67
    %s70 = sphi 0, %s69
    %s84 = sphi 0, %s70
    %s92 = sphi 0, %s94
    %s95 = sphi 0, %s92
    %s96 = sphi 0, %s95
    %s112 = sphi 0, %s96
    %s120 = sphi 0, %s122
    %s123 = sphi 0, %s120
    %s124 = sphi 0, %s123
    %s140 = sphi 0, %s124
  $region4: #{_conv_bn_relu_block.2} parent=0 // loop_header_branch
    %13 = sbr.rel (%p11) target = $region8
  $region5: #{_conv_bn_relu_block.2} parent=0 // loop_body
    %s15 = ssub.s32 %s10, 1
    %s16 = ssub.s32 %s10, 2
    %s26 = sadd.s32 1, %s19
    %p27 = scmp.ge.s32.totalorder %s26, 3
    %s28 = scalar_select %p27, 0, %s26
    %s29 = sadd.s32 1, %s18
    %s30 = scalar_select %p27, %s29, %s18
    %p31 = scmp.ge.s32.totalorder %s30, 8
    %s32 = scalar_select %p31, 0, %s30
    %s33 = sadd.s32 1, %s17
    %s34 = scalar_select %p31, %s33, %s17
    %p35 = scmp.ge.s32.totalorder %s34, 2
    %s36 = scalar_select %p35, 0, %s34
    %s37 = sadd.s32 %s18, %s19
    %s38 = sadd.s32 %s32, %s28
    %s39 = ssub.s32 %s17, %s36
    %s40 = ssub.s32 %s37, %s38
    %s41 = sor.u32 %s39, %s40
    %p42 = scmp.eq.s32.totalorder %s41, 0
    %s44 = sadd.s32 %s43, 1
    %s45 = scalar_select %p42, %s43, %s44
    %p48 = pneg %p42
    %p49 = scmp.eq.s32.totalorder %s10, 47
    %p50 = por %p48, %p49
    %p51 = scmp.ne.s32.totalorder %s43, %s46
    %p52 = scmp.eq.s32.totalorder %s10, 0
    %p53 = por %p51, %p52
    %p54 = scmp.ne.s32.totalorder %s43, %s46
    %p55 = scmp.eq.s32.totalorder %s15, 47
    %p56 = por %p54, %p55
    %p57 = scmp.ne.s32.totalorder %s46, %s47
    %p58 = scmp.eq.s32.totalorder %s15, 0
    %p59 = por %p57, %p58
    %p60 = scmp.ne.s32.totalorder %s46, %s47
    %p61 = scmp.eq.s32.totalorder %s16, 47
    %p62 = por %p60, %p61
    %p64 = scmp.ne.s32.totalorder %s47, %s63
    %p65 = scmp.eq.s32.totalorder %s16, 0
    %p66 = por %p64, %p65
    %s68 = sadd.s32 %s67, 1
    %p71 = scmp.eq.s32.totalorder %s10, 47
    %p72 = scmp.ne.s32.totalorder %s67, %s69
    %p73 = scmp.eq.s32.totalorder %s10, 0
    %p74 = por %p72, %p73
    %p75 = scmp.ne.s32.totalorder %s67, %s69
    %p76 = scmp.eq.s32.totalorder %s15, 47
    %p77 = por %p75, %p76
    %p78 = scmp.ne.s32.totalorder %s69, %s70
    %p79 = scmp.eq.s32.totalorder %s15, 0
    %p80 = por %p78, %p79
    %p81 = scmp.ne.s32.totalorder %s69, %s70
    %p82 = scmp.eq.s32.totalorder %s16, 47
    %p83 = por %p81, %p82
    %p85 = scmp.ne.s32.totalorder %s70, %s84
    %p86 = scmp.eq.s32.totalorder %s16, 0
    %p87 = por %p85, %p86
    %s88 = ssub.s32 %s17, %s36
    %s89 = ssub.s32 %s18, %s32
    %s90 = sor.u32 %s88, %s89
    %p91 = scmp.eq.s32.totalorder %s90, 0
    %s93 = sadd.s32 %s92, 1
    %s94 = scalar_select %p91, %s92, %s93
    %p97 = pneg %p91
    %p98 = scmp.eq.s32.totalorder %s10, 47
    %p99 = por %p97, %p98
    %p100 = scmp.ne.s32.totalorder %s92, %s95
    %p101 = scmp.eq.s32.totalorder %s10, 0
    %p102 = por %p100, %p101
    %p103 = scmp.ne.s32.totalorder %s92, %s95
    %p104 = scmp.eq.s32.totalorder %s15, 47
    %p105 = por %p103, %p104
    %p106 = scmp.ne.s32.totalorder %s95, %s96
    %p107 = scmp.eq.s32.totalorder %s15, 0
    %p108 = por %p106, %p107
    %p109 = scmp.ne.s32.totalorder %s95, %s96
    %p110 = scmp.eq.s32.totalorder %s16, 47
    %p111 = por %p109, %p110
    %p113 = scmp.ne.s32.totalorder %s96, %s112
    %p114 = scmp.eq.s32.totalorder %s16, 0
    %p115 = por %p113, %p114
    %s116 = ssub.s32 %s17, %s36
    %s117 = ssub.s32 %s18, %s32
    %s118 = sor.u32 %s116, %s117
    %p119 = scmp.eq.s32.totalorder %s118, 0
    %s121 = sadd.s32 %s120, 1
    %s122 = scalar_select %p119, %s120, %s121
    %p125 = pneg %p119
    %p126 = scmp.eq.s32.totalorder %s10, 47
    %p127 = por %p125, %p126
    %p128 = scmp.ne.s32.totalorder %s120, %s123
    %p129 = scmp.eq.s32.totalorder %s10, 0
    %p130 = por %p128, %p129
    %p131 = scmp.ne.s32.totalorder %s120, %s123
    %p132 = scmp.eq.s32.totalorder %s15, 47
    %p133 = por %p131, %p132
    %p134 = scmp.ne.s32.totalorder %s123, %s124
    %p135 = scmp.eq.s32.totalorder %s15, 0
    %p136 = por %p134, %p135
    %p137 = scmp.ne.s32.totalorder %s123, %s124
    %p138 = scmp.eq.s32.totalorder %s16, 47
    %p139 = por %p137, %p138
    %p141 = scmp.ne.s32.totalorder %s124, %s140
    %p142 = scmp.eq.s32.totalorder %s16, 0
    %p143 = por %p141, %p142
    %p144 = scmp.le.s32.totalorder 1, %s10
    %p145 = scmp.lt.s32.totalorder %s10, 49
    %p146 = pnand %p144, %p145
    %p147 = pneg %p146
    // Predicated region
    $region9: #{_conv_bn_relu_block.2} parent=5 // pred_check
      _
    $region10: #{_conv_bn_relu_block.2} parent=5 // pred_check_branch
      %149 = sbr.rel (%p146) target = $region12
    $region11: #{_conv_bn_relu_block.2} parent=5 // pred_region
      %s150 = ssub.s32 %s10, 1
      // Predicated region
      $region13: #{_conv_bn_relu_block.2} parent=11 // pred_check
        %p151 = pneg %p80
      $region14: #{_conv_bn_relu_block.2} parent=11 // pred_check_branch
        %153 = sbr.rel (%p151) target = $region16
      $region15: #{_conv_bn_relu_block.2} parent=11 // pred_region
        _
      $region16: #{_conv_bn_relu_block.2} parent=11 // pred_fallthru
        _
    $region12: #{_conv_bn_relu_block.2} parent=5 // pred_fallthru
      _
    %p154 = scmp.lt.s32.totalorder %s10, 48
    // Predicated region
    $region17: #{_conv_bn_relu_block.2} parent=5 // pred_check
      %p155 = pneg %p154
    $region18: #{_conv_bn_relu_block.2} parent=5 // pred_check_branch
      %157 = sbr.rel (%p155) target = $region20
    $region19: #{_conv_bn_relu_block.2} parent=5 // pred_region
      // Predicated region
      $region21: #{_conv_bn_relu_block.2} parent=19 // pred_check
        %p158 = pneg %p53
      $region22: #{_conv_bn_relu_block.2} parent=19 // pred_check_branch
        %160 = sbr.rel (%p158) target = $region24
      $region23: #{_conv_bn_relu_block.2} parent=19 // pred_region
        %s161 = sadd.s32 %s18, %s19
        %p162 = scmp.lt.s32.totalorder %s17, 1
        %s163 = scalar_select %p162, %s17, 1
        %p164 = scmp.lt.s32.totalorder %s161, 9
        %s165 = scalar_select %p164, %s161, 9
        %s166 = smul.addr %s165, 20
        %s167 = smul.addr %s163, 200
        %s168 = sadd.s32 %s166, %s167
        %s169 = smul.addr %s168, 4
        %s170 = scalar_lea.vmem %s0, %s169
        %s171 = sadd.s32 %s18, %s19
      $region24: #{_conv_bn_relu_block.2} parent=19 // pred_fallthru
        _
    $region20: #{_conv_bn_relu_block.2} parent=5 // pred_fallthru
      _
    %p172 = scmp.le.s32.totalorder 1, %s10
    %p173 = scmp.lt.s32.totalorder %s10, 49
    %p174 = pnand %p172, %p173
    %p175 = pneg %p174
    // Predicated region
    $region25: #{_conv_bn_relu_block.2} parent=5 // pred_check
      _
    $region26: #{_conv_bn_relu_block.2} parent=5 // pred_check_branch
      %177 = sbr.rel (%p174) target = $region28
    $region27: #{_conv_bn_relu_block.2} parent=5 // pred_region
      %s178 = ssub.s32 %s10, 1
      %s179 = sadd.s32 %s21, %s22
      %p180 = scmp.lt.s32.totalorder %s20, 1
      %s181 = scalar_select %p180, %s20, 1
      %p182 = scmp.lt.s32.totalorder %s179, 9
      %s183 = scalar_select %p182, %s179, 9
      %s184 = smul.addr %s183, 20
      %s185 = smul.addr %s181, 200
      %s186 = sadd.s32 %s184, %s185
      %s187 = smul.addr %s186, 4
      %s188 = scalar_lea.vmem %s0, %s187
      %p189 = pneg %p59
      %p190 = pneg %p56
      %p191 = pneg %p80
      %p192 = pneg %p77
      %p193 = pneg %p108
      %p194 = pneg %p105
      %p195 = scmp.lt.s32.totalorder %s20, 1
      %s196 = scalar_select %p195, %s20, 1
      %p197 = scmp.lt.s32.totalorder %s21, 7
      %s198 = scalar_select %p197, %s21, 7
      %s199 = smul.addr %s198, 8
      %s200 = smul.addr %s196, 64
      %s201 = sadd.s32 %s199, %s200
      %s202 = smul.addr %s201, 4
      %s203 = scalar_lea.vmem %s2, %s202
      %p204 = pneg %p136
      %p205 = pneg %p133
      %p206 = scmp.lt.s32.totalorder %s20, 1
      %s207 = scalar_select %p206, %s20, 1
      %p208 = scmp.lt.s32.totalorder %s21, 7
      %s209 = scalar_select %p208, %s21, 7
      %s210 = smul.addr %s207, 8
      %s211 = sadd.s32 %s209, %s210
      %s212 = smul.addr %s211, 8
      %s213 = scalar_lea.vmem %s3, %s212
      %s214 = sadd.s32 %s21, %s22
      %p215 = scmp.lt.s32.totalorder %s20, 1
      %s216 = scalar_select %p215, %s20, 1
      %p217 = scmp.lt.s32.totalorder %s214, 9
      %s218 = scalar_select %p217, %s214, 9
      %s219 = smul.addr %s218, 20
      %s220 = smul.addr %s216, 200
      %s221 = sadd.s32 %s219, %s220
      %s222 = smul.addr %s221, 4
      %s223 = scalar_lea.vmem %s0, %s222
      %s224 = sadd.s32 %s21, %s22
      %p225 = scmp.lt.s32.totalorder %s20, 1
      %s226 = scalar_select %p225, %s20, 1
      %p227 = scmp.lt.s32.totalorder %s21, 7
      %s228 = scalar_select %p227, %s21, 7
      %s229 = smul.addr %s228, 8
      %s230 = smul.addr %s226, 64
      %s231 = sadd.s32 %s229, %s230
      %s232 = smul.addr %s231, 4
      %s233 = scalar_lea.vmem %s2, %s232
      %p234 = scmp.lt.s32.totalorder %s20, 1
      %s235 = scalar_select %p234, %s20, 1
      %p236 = scmp.lt.s32.totalorder %s21, 7
      %s237 = scalar_select %p236, %s21, 7
      %s238 = smul.addr %s235, 8
      %s239 = sadd.s32 %s237, %s238
      %s240 = smul.addr %s239, 8
      %s241 = scalar_lea.vmem %s3, %s240
      %p243 = scmp.eq.s32.totalorder %s22, 0
      // Predicated region
      $region29: #{_conv_bn_relu_block.2} parent=27 // pred_check
        %p244 = pneg %p243
      $region30: #{_conv_bn_relu_block.2} parent=27 // pred_check_branch
        %246 = sbr.rel (%p244) target = $region32
      $region31: #{_conv_bn_relu_block.2} parent=27 // pred_region
        %247 = vst [vmem:[#allocation2] sm:$0xff] 0.0
        %248 = vst [vmem:[#allocation2 + $0x8] sm:$0xff] 0.0
        %249 = vst [vmem:[#allocation2 + $0x10] sm:$0xff] 0.0
        %250 = vst [vmem:[#allocation2 + $0x18] sm:$0xff] 0.0
        %251 = vst [vmem:[#allocation2 + $0x20] sm:$0xff] 0.0
        %252 = vst [vmem:[#allocation2 + $0x28] sm:$0xff] 0.0
        %253 = vst [vmem:[#allocation2 + $0x30] sm:$0xff] 0.0
        %254 = vst [vmem:[#allocation2 + $0x38] sm:$0xff] 0.0
      $region32: #{_conv_bn_relu_block.2} parent=27 // pred_fallthru
        _
      %v255 = vld [vmem:[%s223] sm:$0xf]
      %v256 = vld [vmem:[%s223 + $0x4] sm:$0x1]
      %v257 = vld [vmem:[%s223 + $0x8] sm:$0xf]
      %v258 = vld [vmem:[%s223 + $0xc] sm:$0x1]
      %v259 = vld [vmem:[%s223 + $0x10] sm:$0xf]
      %v260 = vld [vmem:[%s223 + $0x14] sm:$0x1]
      %v261 = vld [vmem:[%s223 + $0x18] sm:$0xf]
      %v262 = vld [vmem:[%s223 + $0x1c] sm:$0x1]
      %v263 = vld [vmem:[%s223 + $0x20] sm:$0xf]
      %v264 = vld [vmem:[%s223 + $0x24] sm:$0x1]
      %v265 = vld [vmem:[%s223 + $0x28] sm:$0xf]
      %v266 = vld [vmem:[%s223 + $0x2c] sm:$0x1]
      %v267 = vld [vmem:[%s223 + $0x30] sm:$0xf]
      %v268 = vld [vmem:[%s223 + $0x34] sm:$0x1]
      %v269 = vld [vmem:[%s223 + $0x38] sm:$0xf]
      %v270 = vld [vmem:[%s223 + $0x3c] sm:$0x1]
      %v271 = vld [vmem:[%s223 + $0x40] sm:$0xf]
      %v272 = vld [vmem:[%s223 + $0x44] sm:$0x1]
      %v273 = vld [vmem:[%s223 + $0x48] sm:$0xf]
      %v274 = vld [vmem:[%s223 + $0x4c] sm:$0x1]
      %v275 = vld [vmem:[#allocation2] sm:$0xff]
      %v276 = vld [vmem:[#allocation2 + $0x8] sm:$0xff]
      %v277 = vld [vmem:[#allocation2 + $0x10] sm:$0xff]
      %v278 = vld [vmem:[#allocation2 + $0x18] sm:$0xff]
      %v279 = vld [vmem:[#allocation2 + $0x20] sm:$0xff]
      %v280 = vld [vmem:[#allocation2 + $0x28] sm:$0xff]
      %v281 = vld [vmem:[#allocation2 + $0x30] sm:$0xff]
      %v282 = vld [vmem:[#allocation2 + $0x38] sm:$0xff]
      %s283 = smul.u32 %s22, 9
      %s284 = smul.addr %s283, 2
      %s285 = scalar_lea.vmem %s1, %s284
      %v286 = vld [vmem:[%s285] sm:$0x3]
      %v295 = vunpack.c.l.b16 %v255
      %v296 = vunpack.c.l.b16 %v257
      %v297 = vunpack.c.l.b16 %v259
      %v298 = vunpack.c.l.b16 %v261
      %v299 = vunpack.c.l.b16 %v263
      %v300 = vunpack.c.l.b16 %v265
      %v301 = vunpack.c.l.b16 %v267
      %v302 = vunpack.c.l.b16 %v269
      %v303 = vpack.c.b16 %v296, %v295
      %v304 = vpack.c.b16 %v298, %v297
      %v305 = vpack.c.b16 %v300, %v299
      %v306 = vpack.c.b16 %v302, %v301
      %vm307 = vcmask 31744
      %v309 = vsel %vm307, %v303, 0
      %v312 = vsel %vm307, %v304, 0
      %v315 = vsel %vm307, %v305, 0
      %v318 = vsel %vm307, %v306, 0
      %vm320 = vcmask 1041408
      %v322 = vsel %vm320, %v286, 0
      %324 = vmatprep.subr.bf16.mxu0 0
      %325 = vmatpush1.bf16.msra.mxu0 %v322
      %326 = vmatprep.subr.bf16.mxu0 0
      %327 = vmatpush1.bf16.msra.mxu0 0
      %328 = vmatprep.subr.bf16.mxu0 0
      %329 = vmatpush1.bf16.msra.mxu0 0
      %330 = vmatprep.subr.bf16.mxu0 0
      %331 = vmatpush1.bf16.msra.mxu0 0
      %332 = vmatprep.subr.bf16.mxu0 0
      %333 = vmatpush1.bf16.msra.mxu0 0
      %334 = vmatprep.subr.bf16.mxu0 0
      %335 = vmatpush1.bf16.msra.mxu0 0
      %336 = vmatprep.subr.bf16.mxu0 0
      %337 = vmatpush1.bf16.msra.mxu0 0
      %338 = vmatprep.subr.bf16.mxu0 0
      %339 = vmatpush1.bf16.msra.mxu0 0
      %340 = vmatprep.subr.bf16.mxu0 0
      %341 = vmatpush1.bf16.msra.mxu0 0
      %342 = vmatprep.subr.bf16.mxu0 0
      %343 = vmatpush1.bf16.msra.mxu0 0
      %344 = vmatprep.subr.bf16.mxu0 0
      %345 = vmatpush1.bf16.msra.mxu0 0
      %346 = vmatprep.subr.bf16.mxu0 0
      %347 = vmatpush1.bf16.msra.mxu0 0
      %348 = vmatprep.subr.bf16.mxu0 0
      %349 = vmatpush1.bf16.msra.mxu0 0
      %350 = vmatprep.subr.bf16.mxu0 0
      %351 = vmatpush1.bf16.msra.mxu0 0
      %352 = vmatprep.subr.bf16.mxu0 0
      %353 = vmatpush1.bf16.msra.mxu0 0
      %354 = vmatprep.subr.bf16.mxu0 0
      %355 = vmatpush1.bf16.msra.mxu0 0
      %356 = vmatprep.mubr.bf16.mxu0 0
      %357 = vmatmul.mubr.bf16.gmra.mrb[0].mxu0 %v309
      %v358 = vpop.f32.mrb[0].mxu0
      %v359 = vadd.f32 0.0, %v358
      %v360 = vpop.f32.mrb[0].mxu0
      %v361 = vpop.f32.mrb[0].mxu0
      %v362 = vadd.f32 0.0, %v361
      %v363 = vpop.f32.mrb[0].mxu0
      %364 = vmatprep.mubr.bf16.mxu0 0
      %365 = vmatmul.mubr.bf16.gmra.mrb[0].mxu0 %v312
      %v366 = vpop.f32.mrb[0].mxu0
      %v367 = vadd.f32 0.0, %v366
      %v368 = vpop.f32.mrb[0].mxu0
      %v369 = vpop.f32.mrb[0].mxu0
      %v370 = vadd.f32 0.0, %v369
      %v371 = vpop.f32.mrb[0].mxu0
      %372 = vmatprep.mubr.bf16.mxu0 0
      %373 = vmatmul.mubr.bf16.gmra.mrb[0].mxu0 %v315
      %v374 = vpop.f32.mrb[0].mxu0
      %v375 = vadd.f32 0.0, %v374
      %v376 = vpop.f32.mrb[0].mxu0
      %v377 = vpop.f32.mrb[0].mxu0
      %v378 = vadd.f32 0.0, %v377
      %v379 = vpop.f32.mrb[0].mxu0
      %380 = vmatprep.mubr.bf16.mxu0 0
      %381 = vmatmul.mubr.bf16.gmra.mrb[0].mxu0 %v318
      %v382 = vpop.f32.mrb[0].mxu0
      %v383 = vadd.f32 0.0, %v382
      %v384 = vpop.f32.mrb[0].mxu0
      %v385 = vpop.f32.mrb[0].mxu0
      %v386 = vadd.f32 0.0, %v385
      %v387 = vpop.f32.mrb[0].mxu0
      %388 = vdwg.mxu0
      %v389 = vadd.f32 %v275, %v359
      %v390 = vadd.f32 %v276, %v362
      %v391 = vadd.f32 %v277, %v367
      %v392 = vadd.f32 %v278, %v370
      %v393 = vadd.f32 %v279, %v375
      %v394 = vadd.f32 %v280, %v378
      %v395 = vadd.f32 %v281, %v383
      %v396 = vadd.f32 %v282, %v386
      %vm397 = vsmask.f32 3328
      %vm398 = vsmask.f32 7440
      %vm399 = vmor %vm397, %vm398
      %v401 = vshrl.u32 %v255, 16
      %v403 = vrot.slane %v401, 4
      %v404 = vshll.u32 %v255, 16
      %v406 = vrot.slane %v404, 5
      %v407 = vor.u32 %v403, %v406
      %v408 = vrot.slane %v407, 4
      %v410 = vshll.u32 %v256, 16
      %v412 = vrot.slane %v410, 5
      %v413 = vsel %vm399, %v408, %v412
      %v415 = vshrl.u32 %v257, 16
      %v417 = vrot.slane %v415, 4
      %v418 = vshll.u32 %v257, 16
      %v420 = vrot.slane %v418, 5
      %v421 = vor.u32 %v417, %v420
      %v422 = vrot.slane %v421, 4
      %v424 = vshll.u32 %v258, 16
      %v426 = vrot.slane %v424, 5
      %v427 = vsel %vm399, %v422, %v426
      %v429 = vshrl.u32 %v259, 16
      %v431 = vrot.slane %v429, 4
      %v432 = vshll.u32 %v259, 16
      %v434 = vrot.slane %v432, 5
      %v435 = vor.u32 %v431, %v434
      %v436 = vrot.slane %v435, 4
      %v438 = vshll.u32 %v260, 16
      %v440 = vrot.slane %v438, 5
      %v441 = vsel %vm399, %v436, %v440
      %v443 = vshrl.u32 %v261, 16
      %v445 = vrot.slane %v443, 4
      %v446 = vshll.u32 %v261, 16
      %v448 = vrot.slane %v446, 5
      %v449 = vor.u32 %v445, %v448
      %v450 = vrot.slane %v449, 4
      %v452 = vshll.u32 %v262, 16
      %v454 = vrot.slane %v452, 5
      %v455 = vsel %vm399, %v450, %v454
      %v457 = vshrl.u32 %v263, 16
      %v459 = vrot.slane %v457, 4
      %v460 = vshll.u32 %v263, 16
      %v462 = vrot.slane %v460, 5
      %v463 = vor.u32 %v459, %v462
      %v464 = vrot.slane %v463, 4
      %v466 = vshll.u32 %v264, 16
      %v468 = vrot.slane %v466, 5
      %v469 = vsel %vm399, %v464, %v468
      %v471 = vshrl.u32 %v265, 16
      %v473 = vrot.slane %v471, 4
      %v474 = vshll.u32 %v265, 16
      %v476 = vrot.slane %v474, 5
      %v477 = vor.u32 %v473, %v476
      %v478 = vrot.slane %v477, 4
      %v480 = vshll.u32 %v266, 16
      %v482 = vrot.slane %v480, 5
      %v483 = vsel %vm399, %v478, %v482
      %v485 = vshrl.u32 %v267, 16
      %v487 = vrot.slane %v485, 4
      %v488 = vshll.u32 %v267, 16
      %v490 = vrot.slane %v488, 5
      %v491 = vor.u32 %v487, %v490
      %v492 = vrot.slane %v491, 4
      %v494 = vshll.u32 %v268, 16
      %v496 = vrot.slane %v494, 5
      %v497 = vsel %vm399, %v492, %v496
      %v499 = vshrl.u32 %v269, 16
      %v501 = vrot.slane %v499, 4
      %v502 = vshll.u32 %v269, 16
      %v504 = vrot.slane %v502, 5
      %v505 = vor.u32 %v501, %v504
      %v506 = vrot.slane %v505, 4
      %v508 = vshll.u32 %v270, 16
      %v510 = vrot.slane %v508, 5
      %v511 = vsel %vm399, %v506, %v510
      %s512 = sadd.s32 1, %s283
      %s513 = smul.addr %s512, 2
      %s514 = scalar_lea.vmem %s1, %s513
      %v515 = vld [vmem:[%s514] sm:$0x3]
      %v516 = vunpack.c.l.b16 %v413
      %v517 = vunpack.c.l.b16 %v427
      %v518 = vunpack.c.l.b16 %v441
      %v519 = vunpack.c.l.b16 %v455
      %v520 = vunpack.c.l.b16 %v469
      %v521 = vunpack.c.l.b16 %v483
      %v522 = vunpack.c.l.b16 %v497
      %v523 = vunpack.c.l.b16 %v511
      %v524 = vpack.c.b16 %v517, %v516
      %v525 = vpack.c.b16 %v519, %v518
      %v526 = vpack.c.b16 %v521, %v520
      %v527 = vpack.c.b16 %v523, %v522
      %v529 = vsel %vm307, %v524, 0
      %v532 = vsel %vm307, %v525, 0
      %v535 = vsel %vm307, %v526, 0
      %v538 = vsel %vm307, %v527, 0
      %v541 = vsel %vm320, %v515, 0
      %543 = vmatprep.subr.bf16.mxu0 0
      %544 = vmatpush1.bf16.msra.mxu0 %v541
      %545 = vmatprep.subr.bf16.mxu0 0
      %546 = vmatpush1.bf16.msra.mxu0 0
      %547 = vmatprep.subr.bf16.mxu0 0
      %548 = vmatpush1.bf16.msra.mxu0 0
      %549 = vmatprep.subr.bf16.mxu0 0
      %550 = vmatpush1.bf16.msra.mxu0 0
      %551 = vmatprep.subr.bf16.mxu0 0
      %552 = vmatpush1.bf16.msra.mxu0 0
      %553 = vmatprep.subr.bf16.mxu0 0
      %554 = vmatpush1.bf16.msra.mxu0 0
      %555 = vmatprep.subr.bf16.mxu0 0
      %556 = vmatpush1.bf16.msra.mxu0 0
      %557 = vmatprep.subr.bf16.mxu0 0
      %558 = vmatpush1.bf16.msra.mxu0 0
      %559 = vmatprep.subr.bf16.mxu0 0
      %560 = vmatpush1.bf16.msra.mxu0 0
      %561 = vmatprep.subr.bf16.mxu0 0
      %562 = vmatpush1.bf16.msra.mxu0 0
      %563 = vmatprep.subr.bf16.mxu0 0
      %564 = vmatpush1.bf16.msra.mxu0 0
      %565 = vmatprep.subr.bf16.mxu0 0
      %566 = vmatpush1.bf16.msra.mxu0 0
      %567 = vmatprep.subr.bf16.mxu0 0
      %568 = vmatpush1.bf16.msra.mxu0 0
      %569 = vmatprep.subr.bf16.mxu0 0
      %570 = vmatpush1.bf16.msra.mxu0 0
      %571 = vmatprep.subr.bf16.mxu0 0
      %572 = vmatpush1.bf16.msra.mxu0 0
      %573 = vmatprep.subr.bf16.mxu0 0
      %574 = vmatpush1.bf16.msra.mxu0 0
      %575 = vmatprep.mubr.bf16.mxu0 0
      %576 = vmatmul.mubr.bf16.gmra.mrb[0].mxu0 %v529
      %v577 = vpop.f32.mrb[0].mxu0
      %v578 = vadd.f32 0.0, %v577
      %v579 = vpop.f32.mrb[0].mxu0
      %v580 = vpop.f32.mrb[0].mxu0
      %v581 = vadd.f32 0.0, %v580
      %v582 = vpop.f32.mrb[0].mxu0
      %583 = vmatprep.mubr.bf16.mxu0 0
      %584 = vmatmul.mubr.bf16.gmra.mrb[0].mxu0 %v532
      %v585 = vpop.f32.mrb[0].mxu0
      %v586 = vadd.f32 0.0, %v585
      %v587 = vpop.f32.mrb[0].mxu0
      %v588 = vpop.f32.mrb[0].mxu0
      %v589 = vadd.f32 0.0, %v588
      %v590 = vpop.f32.mrb[0].mxu0
      %591 = vmatprep.mubr.bf16.mxu0 0
      %592 = vmatmul.mubr.bf16.gmra.mrb[0].mxu0 %v535
      %v593 = vpop.f32.mrb[0].mxu0
      %v594 = vadd.f32 0.0, %v593
      %v595 = vpop.f32.mrb[0].mxu0
      %v596 = vpop.f32.mrb[0].mxu0
      %v597 = vadd.f32 0.0, %v596
      %v598 = vpop.f32.mrb[0].mxu0
      %599 = vmatprep.mubr.bf16.mxu0 0
      %600 = vmatmul.mubr.bf16.gmra.mrb[0].mxu0 %v538
      %v601 = vpop.f32.mrb[0].mxu0
      %v602 = vadd.f32 0.0, %v601
      %v603 = vpop.f32.mrb[0].mxu0
      %v604 = vpop.f32.mrb[0].mxu0
      %v605 = vadd.f32 0.0, %v604
      %v606 = vpop.f32.mrb[0].mxu0
      %607 = vdwg.mxu0
      %v608 = vadd.f32 %v389, %v578
      %v609 = vadd.f32 %v390, %v581
      %v610 = vadd.f32 %v391, %v586
      %v611 = vadd.f32 %v392, %v589
      %v612 = vadd.f32 %v393, %v594
      %v613 = vadd.f32 %v394, %v597
      %v614 = vadd.f32 %v395, %v602
      %v615 = vadd.f32 %v396, %v605
      %vm624 = vcmask 1042432
      %vm625 = vcmask 1046532
      %vm626 = vmor %vm624, %vm625
      %v627 = vrot.slane %v255, 5
      %v628 = vrot.slane %v627, 4
      %v629 = vrot.slane %v256, 5
      %v630 = vsel %vm626, %v628, %v629
      %v631 = vrot.slane %v257, 5
      %v632 = vrot.slane %v631, 4
      %v633 = vrot.slane %v258, 5
      %v634 = vsel %vm626, %v632, %v633
      %v635 = vrot.slane %v259, 5
      %v636 = vrot.slane %v635, 4
      %v637 = vrot.slane %v260, 5
      %v638 = vsel %vm626, %v636, %v637
      %v639 = vrot.slane %v261, 5
      %v640 = vrot.slane %v639, 4
      %v641 = vrot.slane %v262, 5
      %v642 = vsel %vm626, %v640, %v641
      %v643 = vrot.slane %v263, 5
      %v644 = vrot.slane %v643, 4
      %v645 = vrot.slane %v264, 5
      %v646 = vsel %vm626, %v644, %v645
      %v647 = vrot.slane %v265, 5
      %v648 = vrot.slane %v647, 4
      %v649 = vrot.slane %v266, 5
      %v650 = vsel %vm626, %v648, %v649
      %v651 = vrot.slane %v267, 5
      %v652 = vrot.slane %v651, 4
      %v653 = vrot.slane %v268, 5
      %v654 = vsel %vm626, %v652, %v653
      %v655 = vrot.slane %v269, 5
      %v656 = vrot.slane %v655, 4
      %v657 = vrot.slane %v270, 5
      %v658 = vsel %vm626, %v656, %v657
      %s659 = sadd.s32 2, %s283
      %s660 = smul.addr %s659, 2
      %s661 = scalar_lea.vmem %s1, %s660
      %v662 = vld [vmem:[%s661] sm:$0x3]
      %v663 = vunpack.c.l.b16 %v630
      %v664 = vunpack.c.l.b16 %v634
      %v665 = vunpack.c.l.b16 %v638
      %v666 = vunpack.c.l.b16 %v642
      %v667 = vunpack.c.l.b16 %v646
      %v668 = vunpack.c.l.b16 %v650
      %v669 = vunpack.c.l.b16 %v654
      %v670 = vunpack.c.l.b16 %v658
      %v671 = vpack.c.b16 %v664, %v663
      %v672 = vpack.c.b16 %v666, %v665
      %v673 = vpack.c.b16 %v668, %v667
      %v674 = vpack.c.b16 %v670, %v669
      %v676 = vsel %vm307, %v671, 0
      %v679 = vsel %vm307, %v672, 0
      %v682 = vsel %vm307, %v673, 0
      %v685 = vsel %vm307, %v674, 0
      %v688 = vsel %vm320, %v662, 0
      %690 = vmatprep.subr.bf16.mxu0 0
      %691 = vmatpush1.bf16.msra.mxu0 %v688
      %692 = vmatprep.subr.bf16.mxu0 0
      %693 = vmatpush1.bf16.msra.mxu0 0
      %694 = vmatprep.subr.bf16.mxu0 0
      %695 = vmatpush1.bf16.msra.mxu0 0
      %696 = vmatprep.subr.bf16.mxu0 0
      %697 = vmatpush1.bf16.msra.mxu0 0
      %698 = vmatprep.subr.bf16.mxu0 0
      %699 = vmatpush1.bf16.msra.mxu0 0
      %700 = vmatprep.subr.bf16.mxu0 0
      %701 = vmatpush1.bf16.msra.mxu0 0
      %702 = vmatprep.subr.bf16.mxu0 0
      %703 = vmatpush1.bf16.msra.mxu0 0
      %704 = vmatprep.subr.bf16.mxu0 0
      %705 = vmatpush1.bf16.msra.mxu0 0
      %706 = vmatprep.subr.bf16.mxu0 0
      %707 = vmatpush1.bf16.msra.mxu0 0
      %708 = vmatprep.subr.bf16.mxu0 0
      %709 = vmatpush1.bf16.msra.mxu0 0
      %710 = vmatprep.subr.bf16.mxu0 0
      %711 = vmatpush1.bf16.msra.mxu0 0
      %712 = vmatprep.subr.bf16.mxu0 0
      %713 = vmatpush1.bf16.msra.mxu0 0
      %714 = vmatprep.subr.bf16.mxu0 0
      %715 = vmatpush1.bf16.msra.mxu0 0
      %716 = vmatprep.subr.bf16.mxu0 0
      %717 = vmatpush1.bf16.msra.mxu0 0
      %718 = vmatprep.subr.bf16.mxu0 0
      %719 = vmatpush1.bf16.msra.mxu0 0
      %720 = vmatprep.subr.bf16.mxu0 0
      %721 = vmatpush1.bf16.msra.mxu0 0
      %722 = vmatprep.mubr.bf16.mxu0 0
      %723 = vmatmul.mubr.bf16.gmra.mrb[0].mxu0 %v676
      %v724 = vpop.f32.mrb[0].mxu0
      %v725 = vadd.f32 0.0, %v724
      %v726 = vpop.f32.mrb[0].mxu0
      %v727 = vpop.f32.mrb[0].mxu0
      %v728 = vadd.f32 0.0, %v727
      %v729 = vpop.f32.mrb[0].mxu0
      %730 = vmatprep.mubr.bf16.mxu0 0
      %731 = vmatmul.mubr.bf16.gmra.mrb[0].mxu0 %v679
      %v732 = vpop.f32.mrb[0].mxu0
      %v733 = vadd.f32 0.0, %v732
      %v734 = vpop.f32.mrb[0].mxu0
      %v735 = vpop.f32.mrb[0].mxu0
      %v736 = vadd.f32 0.0, %v735
      %v737 = vpop.f32.mrb[0].mxu0
      %738 = vmatprep.mubr.bf16.mxu0 0
      %739 = vmatmul.mubr.bf16.gmra.mrb[0].mxu0 %v682
      %v740 = vpop.f32.mrb[0].mxu0
      %v741 = vadd.f32 0.0, %v740
      %v742 = vpop.f32.mrb[0].mxu0
      %v743 = vpop.f32.mrb[0].mxu0
      %v744 = vadd.f32 0.0, %v743
      %v745 = vpop.f32.mrb[0].mxu0
      %746 = vmatprep.mubr.bf16.mxu0 0
      %747 = vmatmul.mubr.bf16.gmra.mrb[0].mxu0 %v685
      %v748 = vpop.f32.mrb[0].mxu0
      %v749 = vadd.f32 0.0, %v748
      %v750 = vpop.f32.mrb[0].mxu0
      %v751 = vpop.f32.mrb[0].mxu0
      %v752 = vadd.f32 0.0, %v751
      %v753 = vpop.f32.mrb[0].mxu0
      %754 = vdwg.mxu0
      %v755 = vadd.f32 %v608, %v725
      %v756 = vadd.f32 %v609, %v728
      %v757 = vadd.f32 %v610, %v733
      %v758 = vadd.f32 %v611, %v736
      %v759 = vadd.f32 %v612, %v741
      %v760 = vadd.f32 %v613, %v744
      %v761 = vadd.f32 %v614, %v749
      %v762 = vadd.f32 %v615, %v752
      %s763 = sadd.s32 3, %s283
      %s764 = smul.addr %s763, 2
      %s765 = scalar_lea.vmem %s1, %s764
      %v766 = vld [vmem:[%s765] sm:$0x3]
      %v768 = vunpack.c.l.b16 %v271
      %v769 = vpack.c.b16 %v297, %v296
      %v770 = vpack.c.b16 %v299, %v298
      %v771 = vpack.c.b16 %v301, %v300
      %v772 = vpack.c.b16 %v768, %v302
      %v774 = vsel %vm307, %v769, 0
      %v777 = vsel %vm307, %v770, 0
      %v780 = vsel %vm307, %v771, 0
      %v783 = vsel %vm307, %v772, 0
      %v786 = vsel %vm320, %v766, 0
      %788 = vmatprep.subr.bf16.mxu0 0
      %789 = vmatpush1.bf16.msra.mxu0 %v786
      %790 = vmatprep.subr.bf16.mxu0 0
      %791 = vmatpush1.bf16.msra.mxu0 0
      %792 = vmatprep.subr.bf16.mxu0 0
      %793 = vmatpush1.bf16.msra.mxu0 0
      %794 = vmatprep.subr.bf16.mxu0 0
      %795 = vmatpush1.bf16.msra.mxu0 0
      %796 = vmatprep.subr.bf16.mxu0 0
      %797 = vmatpush1.bf16.msra.mxu0 0
      %798 = vmatprep.subr.bf16.mxu0 0
      %799 = vmatpush1.bf16.msra.mxu0 0
      %800 = vmatprep.subr.bf16.mxu0 0
      %801 = vmatpush1.bf16.msra.mxu0 0
      %802 = vmatprep.subr.bf16.mxu0 0
      %803 = vmatpush1.bf16.msra.mxu0 0
      %804 = vmatprep.subr.bf16.mxu0 0
      %805 = vmatpush1.bf16.msra.mxu0 0
      %806 = vmatprep.subr.bf16.mxu0 0
      %807 = vmatpush1.bf16.msra.mxu0 0
      %808 = vmatprep.subr.bf16.mxu0 0
      %809 = vmatpush1.bf16.msra.mxu0 0
      %810 = vmatprep.subr.bf16.mxu0 0
      %811 = vmatpush1.bf16.msra.mxu0 0
      %812 = vmatprep.subr.bf16.mxu0 0
      %813 = vmatpush1.bf16.msra.mxu0 0
      %814 = vmatprep.subr.bf16.mxu0 0
      %815 = vmatpush1.bf16.msra.mxu0 0
      %816 = vmatprep.subr.bf16.mxu0 0
      %817 = vmatpush1.bf16.msra.mxu0 0
      %818 = vmatprep.subr.bf16.mxu0 0
      %819 = vmatpush1.bf16.msra.mxu0 0
      %820 = vmatprep.mubr.bf16.mxu0 0
      %821 = vmatmul.mubr.bf16.gmra.mrb[0].mxu0 %v774
      %v822 = vpop.f32.mrb[0].mxu0
      %v823 = vadd.f32 0.0, %v822
      %v824 = vpop.f32.mrb[0].mxu0
      %v825 = vpop.f32.mrb[0].mxu0
      %v826 = vadd.f32 0.0, %v825
      %v827 = vpop.f32.mrb[0].mxu0
      %828 = vmatprep.mubr.bf16.mxu0 0
      %829 = vmatmul.mubr.bf16.gmra.mrb[0].mxu0 %v777
      %v830 = vpop.f32.mrb[0].mxu0
      %v831 = vadd.f32 0.0, %v830
      %v832 = vpop.f32.mrb[0].mxu0
      %v833 = vpop.f32.mrb[0].mxu0
      %v834 = vadd.f32 0.0, %v833
      %v835 = vpop.f32.mrb[0].mxu0
      %836 = vmatprep.mubr.bf16.mxu0 0
      %837 = vmatmul.mubr.bf16.gmra.mrb[0].mxu0 %v780
      %v838 = vpop.f32.mrb[0].mxu0
      %v839 = vadd.f32 0.0, %v838
      %v840 = vpop.f32.mrb[0].mxu0
      %v841 = vpop.f32.mrb[0].mxu0
      %v842 = vadd.f32 0.0, %v841
      %v843 = vpop.f32.mrb[0].mxu0
      %844 = vmatprep.mubr.bf16.mxu0 0
      %845 = vmatmul.mubr.bf16.gmra.mrb[0].mxu0 %v783
      %v846 = vpop.f32.mrb[0].mxu0
      %v847 = vadd.f32 0.0, %v846
      %v848 = vpop.f32.mrb[0].mxu0
      %v849 = vpop.f32.mrb[0].mxu0
      %v850 = vadd.f32 0.0, %v849
      %v851 = vpop.f32.mrb[0].mxu0
      %852 = vdwg.mxu0
      %v853 = vadd.f32 %v755, %v823
      %v854 = vadd.f32 %v756, %v826
      %v855 = vadd.f32 %v757, %v831
      %v856 = vadd.f32 %v758, %v834
      %v857 = vadd.f32 %v759, %v839
      %v858 = vadd.f32 %v760, %v842
      %v859 = vadd.f32 %v761, %v847
      %v860 = vadd.f32 %v762, %v850
      %v862 = vshrl.u32 %v271, 16
      %v864 = vrot.slane %v862, 4
      %v865 = vshll.u32 %v271, 16
      %v867 = vrot.slane %v865, 5
      %v868 = vor.u32 %v864, %v867
      %v869 = vrot.slane %v868, 4
      %v871 = vshll.u32 %v272, 16
      %v873 = vrot.slane %v871, 5
      %v874 = vsel %vm399, %v869, %v873
      %s875 = sadd.s32 4, %s283
      %s876 = smul.addr %s875, 2
      %s877 = scalar_lea.vmem %s1, %s876
      %v878 = vld [vmem:[%s877] sm:$0x3]
      %v879 = vunpack.c.l.b16 %v874
      %v880 = vpack.c.b16 %v518, %v517
      %v881 = vpack.c.b16 %v520, %v519
      %v882 = vpack.c.b16 %v522, %v521
      %v883 = vpack.c.b16 %v879, %v523
      %v885 = vsel %vm307, %v880, 0
      %v888 = vsel %vm307, %v881, 0
      %v891 = vsel %vm307, %v882, 0
      %v894 = vsel %vm307, %v883, 0
      %v897 = vsel %vm320, %v878, 0
      %899 = vmatprep.subr.bf16.mxu0 0
      %900 = vmatpush1.bf16.msra.mxu0 %v897
      %901 = vmatprep.subr.bf16.mxu0 0
      %902 = vmatpush1.bf16.msra.mxu0 0
      %903 = vmatprep.subr.bf16.mxu0 0
      %904 = vmatpush1.bf16.msra.mxu0 0
      %905 = vmatprep.subr.bf16.mxu0 0
      %906 = vmatpush1.bf16.msra.mxu0 0
      %907 = vmatprep.subr.bf16.mxu0 0
      %908 = vmatpush1.bf16.msra.mxu0 0
      %909 = vmatprep.subr.bf16.mxu0 0
      %910 = vmatpush1.bf16.msra.mxu0 0
      %911 = vmatprep.subr.bf16.mxu0 0
      %912 = vmatpush1.bf16.msra.mxu0 0
      %913 = vmatprep.subr.bf16.mxu0 0
      %914 = vmatpush1.bf16.msra.mxu0 0
      %915 = vmatprep.subr.bf16.mxu0 0
      %916 = vmatpush1.bf16.msra.mxu0 0
      %917 = vmatprep.subr.bf16.mxu0 0
      %918 = vmatpush1.bf16.msra.mxu0 0
      %919 = vmatprep.subr.bf16.mxu0 0
      %920 = vmatpush1.bf16.msra.mxu0 0
      %921 = vmatprep.subr.bf16.mxu0 0
      %922 = vmatpush1.bf16.msra.mxu0 0
      %923 = vmatprep.subr.bf16.mxu0 0
      %924 = vmatpush1.bf16.msra.mxu0 0
      %925 = vmatprep.subr.bf16.mxu0 0
      %926 = vmatpush1.bf16.msra.mxu0 0
      %927 = vmatprep.subr.bf16.mxu0 0
      %928 = vmatpush1.bf16.msra.mxu0 0
      %929 = vmatprep.subr.bf16.mxu0 0
      %930 = vmatpush1.bf16.msra.mxu0 0
      %931 = vmatprep.mubr.bf16.mxu0 0
      %932 = vmatmul.mubr.bf16.gmra.mrb[0].mxu0 %v885
      %v933 = vpop.f32.mrb[0].mxu0
      %v934 = vadd.f32 0.0, %v933
      %v935 = vpop.f32.mrb[0].mxu0
      %v936 = vpop.f32.mrb[0].mxu0
      %v937 = vadd.f32 0.0, %v936
      %v938 = vpop.f32.mrb[0].mxu0
      %939 = vmatprep.mubr.bf16.mxu0 0
      %940 = vmatmul.mubr.bf16.gmra.mrb[0].mxu0 %v888
      %v941 = vpop.f32.mrb[0].mxu0
      %v942 = vadd.f32 0.0, %v941
      %v943 = vpop.f32.mrb[0].mxu0
      %v944 = vpop.f32.mrb[0].mxu0
      %v945 = vadd.f32 0.0, %v944
      %v946 = vpop.f32.mrb[0].mxu0
      %947 = vmatprep.mubr.bf16.mxu0 0
      %948 = vmatmul.mubr.bf16.gmra.mrb[0].mxu0 %v891
      %v949 = vpop.f32.mrb[0].mxu0
      %v950 = vadd.f32 0.0, %v949
      %v951 = vpop.f32.mrb[0].mxu0
      %v952 = vpop.f32.mrb[0].mxu0
      %v953 = vadd.f32 0.0, %v952
      %v954 = vpop.f32.mrb[0].mxu0
      %955 = vmatprep.mubr.bf16.mxu0 0
      %956 = vmatmul.mubr.bf16.gmra.mrb[0].mxu0 %v894
      %v957 = vpop.f32.mrb[0].mxu0
      %v958 = vadd.f32 0.0, %v957
      %v959 = vpop.f32.mrb[0].mxu0
      %v960 = vpop.f32.mrb[0].mxu0
      %v961 = vadd.f32 0.0, %v960
      %v962 = vpop.f32.mrb[0].mxu0
      %963 = vdwg.mxu0
      %v964 = vadd.f32 %v853, %v934
      %v965 = vadd.f32 %v854, %v937
      %v966 = vadd.f32 %v855, %v942
      %v967 = vadd.f32 %v856, %v945
      %v968 = vadd.f32 %v857, %v950
      %v969 = vadd.f32 %v858, %v953
      %v970 = vadd.f32 %v859, %v958
      %v971 = vadd.f32 %v860, %v961
      %v973 = vrot.slane %v271, 5
      %v974 = vrot.slane %v973, 4
      %v975 = vrot.slane %v272, 5
      %v976 = vsel %vm626, %v974, %v975
      %s977 = sadd.s32 5, %s283
      %s978 = smul.addr %s977, 2
      %s979 = scalar_lea.vmem %s1, %s978
      %v980 = vld [vmem:[%s979] sm:$0x3]
      %v981 = vunpack.c.l.b16 %v976
      %v982 = vpack.c.b16 %v665, %v664
      %v983 = vpack.c.b16 %v667, %v666
      %v984 = vpack.c.b16 %v669, %v668
      %v985 = vpack.c.b16 %v981, %v670
      %v987 = vsel %vm307, %v982, 0
      %v990 = vsel %vm307, %v983, 0
      %v993 = vsel %vm307, %v984, 0
      %v996 = vsel %vm307, %v985, 0
      %v999 = vsel %vm320, %v980, 0
      %1001 = vmatprep.subr.bf16.mxu0 0
      %1002 = vmatpush1.bf16.msra.mxu0 %v999
      %1003 = vmatprep.subr.bf16.mxu0 0
      %1004 = vmatpush1.bf16.msra.mxu0 0
      %1005 = vmatprep.subr.bf16.mxu0 0
      %1006 = vmatpush1.bf16.msra.mxu0 0
      %1007 = vmatprep.subr.bf16.mxu0 0
      %1008 = vmatpush1.bf16.msra.mxu0 0
      %1009 = vmatprep.subr.bf16.mxu0 0
      %1010 = vmatpush1.bf16.msra.mxu0 0
      %1011 = vmatprep.subr.bf16.mxu0 0
      %1012 = vmatpush1.bf16.msra.mxu0 0
      %1013 = vmatprep.subr.bf16.mxu0 0
      %1014 = vmatpush1.bf16.msra.mxu0 0
      %1015 = vmatprep.subr.bf16.mxu0 0
      %1016 = vmatpush1.bf16.msra.mxu0 0
      %1017 = vmatprep.subr.bf16.mxu0 0
      %1018 = vmatpush1.bf16.msra.mxu0 0
      %1019 = vmatprep.subr.bf16.mxu0 0
      %1020 = vmatpush1.bf16.msra.mxu0 0
      %1021 = vmatprep.subr.bf16.mxu0 0
      %1022 = vmatpush1.bf16.msra.mxu0 0
      %1023 = vmatprep.subr.bf16.mxu0 0
      %1024 = vmatpush1.bf16.msra.mxu0 0
      %1025 = vmatprep.subr.bf16.mxu0 0
      %1026 = vmatpush1.bf16.msra.mxu0 0
      %1027 = vmatprep.subr.bf16.mxu0 0
      %1028 = vmatpush1.bf16.msra.mxu0 0
      %1029 = vmatprep.subr.bf16.mxu0 0
      %1030 = vmatpush1.bf16.msra.mxu0 0
      %1031 = vmatprep.subr.bf16.mxu0 0
      %1032 = vmatpush1.bf16.msra.mxu0 0
      %1033 = vmatprep.mubr.bf16.mxu0 0
      %1034 = vmatmul.mubr.bf16.gmra.mrb[0].mxu0 %v987
      %v1035 = vpop.f32.mrb[0].mxu0
      %v1036 = vadd.f32 0.0, %v1035
      %v1037 = vpop.f32.mrb[0].mxu0
      %v1038 = vpop.f32.mrb[0].mxu0
      %v1039 = vadd.f32 0.0, %v1038
      %v1040 = vpop.f32.mrb[0].mxu0
      %1041 = vmatprep.mubr.bf16.mxu0 0
      %1042 = vmatmul.mubr.bf16.gmra.mrb[0].mxu0 %v990
      %v1043 = vpop.f32.mrb[0].mxu0
      %v1044 = vadd.f32 0.0, %v1043
      %v1045 = vpop.f32.mrb[0].mxu0
      %v1046 = vpop.f32.mrb[0].mxu0
      %v1047 = vadd.f32 0.0, %v1046
      %v1048 = vpop.f32.mrb[0].mxu0
      %1049 = vmatprep.mubr.bf16.mxu0 0
      %1050 = vmatmul.mubr.bf16.gmra.mrb[0].mxu0 %v993
      %v1051 = vpop.f32.mrb[0].mxu0
      %v1052 = vadd.f32 0.0, %v1051
      %v1053 = vpop.f32.mrb[0].mxu0
      %v1054 = vpop.f32.mrb[0].mxu0
      %v1055 = vadd.f32 0.0, %v1054
      %v1056 = vpop.f32.mrb[0].mxu0
      %1057 = vmatprep.mubr.bf16.mxu0 0
      %1058 = vmatmul.mubr.bf16.gmra.mrb[0].mxu0 %v996
      %v1059 = vpop.f32.mrb[0].mxu0
      %v1060 = vadd.f32 0.0, %v1059
      %v1061 = vpop.f32.mrb[0].mxu0
      %v1062 = vpop.f32.mrb[0].mxu0
      %v1063 = vadd.f32 0.0, %v1062
      %v1064 = vpop.f32.mrb[0].mxu0
      %1065 = vdwg.mxu0
      %v1066 = vadd.f32 %v964, %v1036
      %v1067 = vadd.f32 %v965, %v1039
      %v1068 = vadd.f32 %v966, %v1044
      %v1069 = vadd.f32 %v967, %v1047
      %v1070 = vadd.f32 %v968, %v1052
      %v1071 = vadd.f32 %v969, %v1055
      %v1072 = vadd.f32 %v970, %v1060
      %v1073 = vadd.f32 %v971, %v1063
      %s1074 = sadd.s32 6, %s283
      %s1075 = smul.addr %s1074, 2
      %s1076 = scalar_lea.vmem %s1, %s1075
      %v1077 = vld [vmem:[%s1076] sm:$0x3]
      %v1079 = vunpack.c.l.b16 %v273
      %v1080 = vpack.c.b16 %v1079, %v768
      %v1082 = vsel %vm307, %v1080, 0
      %v1085 = vsel %vm320, %v1077, 0
      %1087 = vmatprep.subr.bf16.mxu0 0
      %1088 = vmatpush1.bf16.msra.mxu0 %v1085
      %1089 = vmatprep.subr.bf16.mxu0 0
      %1090 = vmatpush1.bf16.msra.mxu0 0
      %1091 = vmatprep.subr.bf16.mxu0 0
      %1092 = vmatpush1.bf16.msra.mxu0 0
      %1093 = vmatprep.subr.bf16.mxu0 0
      %1094 = vmatpush1.bf16.msra.mxu0 0
      %1095 = vmatprep.subr.bf16.mxu0 0
      %1096 = vmatpush1.bf16.msra.mxu0 0
      %1097 = vmatprep.subr.bf16.mxu0 0
      %1098 = vmatpush1.bf16.msra.mxu0 0
      %1099 = vmatprep.subr.bf16.mxu0 0
      %1100 = vmatpush1.bf16.msra.mxu0 0
      %1101 = vmatprep.subr.bf16.mxu0 0
      %1102 = vmatpush1.bf16.msra.mxu0 0
      %1103 = vmatprep.subr.bf16.mxu0 0
      %1104 = vmatpush1.bf16.msra.mxu0 0
      %1105 = vmatprep.subr.bf16.mxu0 0
      %1106 = vmatpush1.bf16.msra.mxu0 0
      %1107 = vmatprep.subr.bf16.mxu0 0
      %1108 = vmatpush1.bf16.msra.mxu0 0
      %1109 = vmatprep.subr.bf16.mxu0 0
      %1110 = vmatpush1.bf16.msra.mxu0 0
      %1111 = vmatprep.subr.bf16.mxu0 0
      %1112 = vmatpush1.bf16.msra.mxu0 0
      %1113 = vmatprep.subr.bf16.mxu0 0
      %1114 = vmatpush1.bf16.msra.mxu0 0
      %1115 = vmatprep.subr.bf16.mxu0 0
      %1116 = vmatpush1.bf16.msra.mxu0 0
      %1117 = vmatprep.subr.bf16.mxu0 0
      %1118 = vmatpush1.bf16.msra.mxu0 0
      %1119 = vmatprep.mubr.bf16.mxu0 0
      %1120 = vmatmul.mubr.bf16.gmra.mrb[0].mxu0 %v312
      %v1121 = vpop.f32.mrb[0].mxu0
      %v1122 = vadd.f32 0.0, %v1121
      %v1123 = vpop.f32.mrb[0].mxu0
      %v1124 = vpop.f32.mrb[0].mxu0
      %v1125 = vadd.f32 0.0, %v1124
      %v1126 = vpop.f32.mrb[0].mxu0
      %1127 = vmatprep.mubr.bf16.mxu0 0
      %1128 = vmatmul.mubr.bf16.gmra.mrb[0].mxu0 %v315
      %v1129 = vpop.f32.mrb[0].mxu0
      %v1130 = vadd.f32 0.0, %v1129
      %v1131 = vpop.f32.mrb[0].mxu0
      %v1132 = vpop.f32.mrb[0].mxu0
      %v1133 = vadd.f32 0.0, %v1132
      %v1134 = vpop.f32.mrb[0].mxu0
      %1135 = vmatprep.mubr.bf16.mxu0 0
      %1136 = vmatmul.mubr.bf16.gmra.mrb[0].mxu0 %v318
      %v1137 = vpop.f32.mrb[0].mxu0
      %v1138 = vadd.f32 0.0, %v1137
      %v1139 = vpop.f32.mrb[0].mxu0
      %v1140 = vpop.f32.mrb[0].mxu0
      %v1141 = vadd.f32 0.0, %v1140
      %v1142 = vpop.f32.mrb[0].mxu0
      %1143 = vmatprep.mubr.bf16.mxu0 0
      %1144 = vmatmul.mubr.bf16.gmra.mrb[0].mxu0 %v1082
      %v1145 = vpop.f32.mrb[0].mxu0
      %v1146 = vadd.f32 0.0, %v1145
      %v1147 = vpop.f32.mrb[0].mxu0
      %v1148 = vpop.f32.mrb[0].mxu0
      %v1149 = vadd.f32 0.0, %v1148
      %v1150 = vpop.f32.mrb[0].mxu0
      %1151 = vdwg.mxu0
      %v1152 = vadd.f32 %v1066, %v1122
      %v1153 = vadd.f32 %v1067, %v1125
      %v1154 = vadd.f32 %v1068, %v1130
      %v1155 = vadd.f32 %v1069, %v1133
      %v1156 = vadd.f32 %v1070, %v1138
      %v1157 = vadd.f32 %v1071, %v1141
      %v1158 = vadd.f32 %v1072, %v1146
      %v1159 = vadd.f32 %v1073, %v1149
      %v1161 = vshrl.u32 %v273, 16
      %v1163 = vrot.slane %v1161, 4
      %v1164 = vshll.u32 %v273, 16
      %v1166 = vrot.slane %v1164, 5
      %v1167 = vor.u32 %v1163, %v1166
      %v1168 = vrot.slane %v1167, 4
      %v1170 = vshll.u32 %v274, 16
      %v1172 = vrot.slane %v1170, 5
      %v1173 = vsel %vm399, %v1168, %v1172
      %s1174 = sadd.s32 7, %s283
      %s1175 = smul.addr %s1174, 2
      %s1176 = scalar_lea.vmem %s1, %s1175
      %v1177 = vld [vmem:[%s1176] sm:$0x3]
      %v1178 = vunpack.c.l.b16 %v1173
      %v1179 = vpack.c.b16 %v1178, %v879
      %v1181 = vsel %vm307, %v1179, 0
      %v1184 = vsel %vm320, %v1177, 0
      %1186 = vmatprep.subr.bf16.mxu0 0
      %1187 = vmatpush1.bf16.msra.mxu0 %v1184
      %1188 = vmatprep.subr.bf16.mxu0 0
      %1189 = vmatpush1.bf16.msra.mxu0 0
      %1190 = vmatprep.subr.bf16.mxu0 0
      %1191 = vmatpush1.bf16.msra.mxu0 0
      %1192 = vmatprep.subr.bf16.mxu0 0
      %1193 = vmatpush1.bf16.msra.mxu0 0
      %1194 = vmatprep.subr.bf16.mxu0 0
      %1195 = vmatpush1.bf16.msra.mxu0 0
      %1196 = vmatprep.subr.bf16.mxu0 0
      %1197 = vmatpush1.bf16.msra.mxu0 0
      %1198 = vmatprep.subr.bf16.mxu0 0
      %1199 = vmatpush1.bf16.msra.mxu0 0
      %1200 = vmatprep.subr.bf16.mxu0 0
      %1201 = vmatpush1.bf16.msra.mxu0 0
      %1202 = vmatprep.subr.bf16.mxu0 0
      %1203 = vmatpush1.bf16.msra.mxu0 0
      %1204 = vmatprep.subr.bf16.mxu0 0
      %1205 = vmatpush1.bf16.msra.mxu0 0
      %1206 = vmatprep.subr.bf16.mxu0 0
      %1207 = vmatpush1.bf16.msra.mxu0 0
      %1208 = vmatprep.subr.bf16.mxu0 0
      %1209 = vmatpush1.bf16.msra.mxu0 0
      %1210 = vmatprep.subr.bf16.mxu0 0
      %1211 = vmatpush1.bf16.msra.mxu0 0
      %1212 = vmatprep.subr.bf16.mxu0 0
      %1213 = vmatpush1.bf16.msra.mxu0 0
      %1214 = vmatprep.subr.bf16.mxu0 0
      %1215 = vmatpush1.bf16.msra.mxu0 0
      %1216 = vmatprep.subr.bf16.mxu0 0
      %1217 = vmatpush1.bf16.msra.mxu0 0
      %1218 = vmatprep.mubr.bf16.mxu0 0
      %1219 = vmatmul.mubr.bf16.gmra.mrb[0].mxu0 %v532
      %v1220 = vpop.f32.mrb[0].mxu0
      %v1221 = vadd.f32 0.0, %v1220
      %v1222 = vpop.f32.mrb[0].mxu0
      %v1223 = vpop.f32.mrb[0].mxu0
      %v1224 = vadd.f32 0.0, %v1223
      %v1225 = vpop.f32.mrb[0].mxu0
      %1226 = vmatprep.mubr.bf16.mxu0 0
      %1227 = vmatmul.mubr.bf16.gmra.mrb[0].mxu0 %v535
      %v1228 = vpop.f32.mrb[0].mxu0
      %v1229 = vadd.f32 0.0, %v1228
      %v1230 = vpop.f32.mrb[0].mxu0
      %v1231 = vpop.f32.mrb[0].mxu0
      %v1232 = vadd.f32 0.0, %v1231
      %v1233 = vpop.f32.mrb[0].mxu0
      %1234 = vmatprep.mubr.bf16.mxu0 0
      %1235 = vmatmul.mubr.bf16.gmra.mrb[0].mxu0 %v538
      %v1236 = vpop.f32.mrb[0].mxu0
      %v1237 = vadd.f32 0.0, %v1236
      %v1238 = vpop.f32.mrb[0].mxu0
      %v1239 = vpop.f32.mrb[0].mxu0
      %v1240 = vadd.f32 0.0, %v1239
      %v1241 = vpop.f32.mrb[0].mxu0
      %1242 = vmatprep.mubr.bf16.mxu0 0
      %1243 = vmatmul.mubr.bf16.gmra.mrb[0].mxu0 %v1181
      %v1244 = vpop.f32.mrb[0].mxu0
      %v1245 = vadd.f32 0.0, %v1244
      %v1246 = vpop.f32.mrb[0].mxu0
      %v1247 = vpop.f32.mrb[0].mxu0
      %v1248 = vadd.f32 0.0, %v1247
      %v1249 = vpop.f32.mrb[0].mxu0
      %1250 = vdwg.mxu0
      %v1251 = vadd.f32 %v1152, %v1221
      %v1252 = vadd.f32 %v1153, %v1224
      %v1253 = vadd.f32 %v1154, %v1229
      %v1254 = vadd.f32 %v1155, %v1232
      %v1255 = vadd.f32 %v1156, %v1237
      %v1256 = vadd.f32 %v1157, %v1240
      %v1257 = vadd.f32 %v1158, %v1245
      %v1258 = vadd.f32 %v1159, %v1248
      %v1260 = vrot.slane %v273, 5
      %v1261 = vrot.slane %v1260, 4
      %v1262 = vrot.slane %v274, 5
      %v1263 = vsel %vm626, %v1261, %v1262
      %s1264 = sadd.s32 8, %s283
      %s1265 = smul.addr %s1264, 2
      %s1266 = scalar_lea.vmem %s1, %s1265
      %v1267 = vld [vmem:[%s1266] sm:$0x3]
      %v1268 = vunpack.c.l.b16 %v1263
      %v1269 = vpack.c.b16 %v1268, %v981
      %v1271 = vsel %vm307, %v1269, 0
      %v1274 = vsel %vm320, %v1267, 0
      %1276 = vmatprep.subr.bf16.mxu0 0
      %1277 = vmatpush1.bf16.msra.mxu0 %v1274
      %1278 = vmatprep.subr.bf16.mxu0 0
      %1279 = vmatpush1.bf16.msra.mxu0 0
      %1280 = vmatprep.subr.bf16.mxu0 0
      %1281 = vmatpush1.bf16.msra.mxu0 0
      %1282 = vmatprep.subr.bf16.mxu0 0
      %1283 = vmatpush1.bf16.msra.mxu0 0
      %1284 = vmatprep.subr.bf16.mxu0 0
      %1285 = vmatpush1.bf16.msra.mxu0 0
      %1286 = vmatprep.subr.bf16.mxu0 0
      %1287 = vmatpush1.bf16.msra.mxu0 0
      %1288 = vmatprep.subr.bf16.mxu0 0
      %1289 = vmatpush1.bf16.msra.mxu0 0
      %1290 = vmatprep.subr.bf16.mxu0 0
      %1291 = vmatpush1.bf16.msra.mxu0 0
      %1292 = vmatprep.subr.bf16.mxu0 0
      %1293 = vmatpush1.bf16.msra.mxu0 0
      %1294 = vmatprep.subr.bf16.mxu0 0
      %1295 = vmatpush1.bf16.msra.mxu0 0
      %1296 = vmatprep.subr.bf16.mxu0 0
      %1297 = vmatpush1.bf16.msra.mxu0 0
      %1298 = vmatprep.subr.bf16.mxu0 0
      %1299 = vmatpush1.bf16.msra.mxu0 0
      %1300 = vmatprep.subr.bf16.mxu0 0
      %1301 = vmatpush1.bf16.msra.mxu0 0
      %1302 = vmatprep.subr.bf16.mxu0 0
      %1303 = vmatpush1.bf16.msra.mxu0 0
      %1304 = vmatprep.subr.bf16.mxu0 0
      %1305 = vmatpush1.bf16.msra.mxu0 0
      %1306 = vmatprep.subr.bf16.mxu0 0
      %1307 = vmatpush1.bf16.msra.mxu0 0
      %1308 = vmatprep.mubr.bf16.mxu0 0
      %1309 = vmatmul.mubr.bf16.gmra.mrb[0].mxu0 %v679
      %v1310 = vpop.f32.mrb[0].mxu0
      %v1311 = vadd.f32 0.0, %v1310
      %v1312 = vpop.f32.mrb[0].mxu0
      %v1313 = vpop.f32.mrb[0].mxu0
      %v1314 = vadd.f32 0.0, %v1313
      %v1315 = vpop.f32.mrb[0].mxu0
      %1316 = vmatprep.mubr.bf16.mxu0 0
      %1317 = vmatmul.mubr.bf16.gmra.mrb[0].mxu0 %v682
      %v1318 = vpop.f32.mrb[0].mxu0
      %v1319 = vadd.f32 0.0, %v1318
      %v1320 = vpop.f32.mrb[0].mxu0
      %v1321 = vpop.f32.mrb[0].mxu0
      %v1322 = vadd.f32 0.0, %v1321
      %v1323 = vpop.f32.mrb[0].mxu0
      %1324 = vmatprep.mubr.bf16.mxu0 0
      %1325 = vmatmul.mubr.bf16.gmra.mrb[0].mxu0 %v685
      %v1326 = vpop.f32.mrb[0].mxu0
      %v1327 = vadd.f32 0.0, %v1326
      %v1328 = vpop.f32.mrb[0].mxu0
      %v1329 = vpop.f32.mrb[0].mxu0
      %v1330 = vadd.f32 0.0, %v1329
      %v1331 = vpop.f32.mrb[0].mxu0
      %1332 = vmatprep.mubr.bf16.mxu0 0
      %1333 = vmatmul.mubr.bf16.gmra.mrb[0].mxu0 %v1271
      %v1334 = vpop.f32.mrb[0].mxu0
      %v1335 = vadd.f32 0.0, %v1334
      %v1336 = vpop.f32.mrb[0].mxu0
      %v1337 = vpop.f32.mrb[0].mxu0
      %v1338 = vadd.f32 0.0, %v1337
      %v1339 = vpop.f32.mrb[0].mxu0
      %1340 = vdwg.mxu0
      %v1341 = vadd.f32 %v1251, %v1311
      %v1342 = vadd.f32 %v1252, %v1314
      %v1343 = vadd.f32 %v1253, %v1319
      %v1344 = vadd.f32 %v1254, %v1322
      %v1345 = vadd.f32 %v1255, %v1327
      %v1346 = vadd.f32 %v1256, %v1330
      %v1347 = vadd.f32 %v1257, %v1335
      %v1348 = vadd.f32 %v1258, %v1338
      %1349 = vst [vmem:[#allocation2] sm:$0xff] %v1341
      %1350 = vst [vmem:[#allocation2 + $0x8] sm:$0xff] %v1342
      %1351 = vst [vmem:[#allocation2 + $0x10] sm:$0xff] %v1343
      %1352 = vst [vmem:[#allocation2 + $0x18] sm:$0xff] %v1344
      %1353 = vst [vmem:[#allocation2 + $0x20] sm:$0xff] %v1345
      %1354 = vst [vmem:[#allocation2 + $0x28] sm:$0xff] %v1346
      %1355 = vst [vmem:[#allocation2 + $0x30] sm:$0xff] %v1347
      %1356 = vst [vmem:[#allocation2 + $0x38] sm:$0xff] %v1348
      %p1357 = scmp.eq.s32.totalorder %s22, 2
      // Predicated region
      $region33: #{_conv_bn_relu_block.2} parent=27 // pred_check
        %p1358 = pneg %p1357
      $region34: #{_conv_bn_relu_block.2} parent=27 // pred_check_branch
        %1360 = sbr.rel (%p1358) target = $region36
      $region35: #{_conv_bn_relu_block.2} parent=27 // pred_region
        %v1361 = vpack.c.bf16 %v1342, %v1341
        %v1362 = vpack.c.bf16 %v1344, %v1343
        %v1363 = vpack.c.bf16 %v1346, %v1345
        %v1364 = vpack.c.bf16 %v1348, %v1347
        %v1369 = vunpack.c.l.b16 %v1361
        %v1370 = vunpack.c.h.b16 %v1361
        %v1371 = vunpack.c.l.b16 %v1362
        %v1372 = vunpack.c.h.b16 %v1362
        %v1373 = vunpack.c.l.b16 %v1363
        %v1374 = vunpack.c.h.b16 %v1363
        %v1375 = vunpack.c.l.b16 %v1364
        %v1376 = vunpack.c.h.b16 %v1364
        %v1377 = vpack.c.b16 %v1369, %v1369
        %v1378 = vpack.c.b16 %v1370, %v1370
        %v1379 = vpack.c.b16 %v1371, %v1371
        %v1380 = vpack.c.b16 %v1372, %v1372
        %v1381 = vpack.c.b16 %v1373, %v1373
        %v1382 = vpack.c.b16 %v1374, %v1374
        %v1383 = vpack.c.b16 %v1375, %v1375
        %v1384 = vpack.c.b16 %v1376, %v1376
        %1393 = vst [vmem:[%s233] sm:$0xf] %v1377
        %1394 = vst [vmem:[%s233 + $0x4] sm:$0xf] %v1378
        %1395 = vst [vmem:[%s233 + $0x8] sm:$0xf] %v1379
        %1396 = vst [vmem:[%s233 + $0xc] sm:$0xf] %v1380
        %1397 = vst [vmem:[%s233 + $0x10] sm:$0xf] %v1381
        %1398 = vst [vmem:[%s233 + $0x14] sm:$0xf] %v1382
        %1399 = vst [vmem:[%s233 + $0x18] sm:$0xf] %v1383
        %1400 = vst [vmem:[%s233 + $0x1c] sm:$0xf] %v1384
        %v1401 = vadd.f32 %v1341, %v1342
        %v1402 = vadd.f32 %v1401, %v1343
        %v1403 = vadd.f32 %v1402, %v1344
        %v1404 = vadd.f32 %v1403, %v1345
        %v1405 = vadd.f32 %v1404, %v1346
        %v1406 = vadd.f32 %v1405, %v1347
        %v1407 = vadd.f32 %v1406, %v1348
        %v1408 = vrot.slane %v1407, 4
        %v1409 = vadd.f32 %v1407, %v1408
        %v1410 = vrot.slane %v1409, 2
        %v1411 = vadd.f32 %v1409, %v1410
        %v1412 = vrot.slane %v1411, 1
        %v1413 = vadd.f32 %v1411, %v1412
        %v1414 = vmul.f32 %v1341, %v1341
        %v1415 = vmul.f32 %v1342, %v1342
        %v1416 = vmul.f32 %v1343, %v1343
        %v1417 = vmul.f32 %v1344, %v1344
        %v1418 = vmul.f32 %v1345, %v1345
        %v1419 = vmul.f32 %v1346, %v1346
        %v1420 = vmul.f32 %v1347, %v1347
        %v1421 = vmul.f32 %v1348, %v1348
        %v1422 = vadd.f32 %v1414, %v1415
        %v1423 = vadd.f32 %v1422, %v1416
        %v1424 = vadd.f32 %v1423, %v1417
        %v1425 = vadd.f32 %v1424, %v1418
        %v1426 = vadd.f32 %v1425, %v1419
        %v1427 = vadd.f32 %v1426, %v1420
        %v1428 = vadd.f32 %v1427, %v1421
        %v1429 = vrot.slane %v1428, 4
        %v1430 = vadd.f32 %v1428, %v1429
        %v1431 = vrot.slane %v1430, 2
        %v1432 = vadd.f32 %v1430, %v1431
        %v1433 = vrot.slane %v1432, 1
        %v1434 = vadd.f32 %v1432, %v1433
        %vm1435 = vcmask 1040384
        %v1436 = vsel %vm1435, %v1413, %v1434
        %v1437 = vsel %vm320, %v1436, 0.0
        %1438 = vst [vmem:[%s241] sm:$0xff] %v1437
      $region36: #{_conv_bn_relu_block.2} parent=27 // pred_fallthru
        _
      %p1439 = scmp.lt.s32.totalorder %s20, 1
      %s1440 = scalar_select %p1439, %s20, 1
      %p1441 = scmp.lt.s32.totalorder %s21, 7
      %s1442 = scalar_select %p1441, %s21, 7
      %s1443 = smul.addr %s1442, 8
      %s1444 = smul.addr %s1440, 64
      %s1445 = sadd.s32 %s1443, %s1444
      %s1446 = smul.addr %s1445, 4
      %s1447 = scalar_lea.vmem %s2, %s1446
      %p1448 = scmp.lt.s32.totalorder %s20, 1
      %s1449 = scalar_select %p1448, %s20, 1
      %p1450 = scmp.lt.s32.totalorder %s21, 7
      %s1451 = scalar_select %p1450, %s21, 7
      %s1452 = smul.addr %s1449, 8
      %s1453 = sadd.s32 %s1451, %s1452
      %s1454 = smul.addr %s1453, 8
      %s1455 = scalar_lea.vmem %s3, %s1454
      // Predicated region
      $region37: #{_conv_bn_relu_block.2} parent=27 // pred_check
        %p1456 = pneg %p105
      $region38: #{_conv_bn_relu_block.2} parent=27 // pred_check_branch
        %1458 = sbr.rel (%p1456) target = $region40
      $region39: #{_conv_bn_relu_block.2} parent=27 // pred_region
        _
      $region40: #{_conv_bn_relu_block.2} parent=27 // pred_fallthru
        _
      // Predicated region
      $region41: #{_conv_bn_relu_block.2} parent=27 // pred_check
        %p1459 = pneg %p133
      $region42: #{_conv_bn_relu_block.2} parent=27 // pred_check_branch
        %1461 = sbr.rel (%p1459) target = $region44
      $region43: #{_conv_bn_relu_block.2} parent=27 // pred_region
        _
      $region44: #{_conv_bn_relu_block.2} parent=27 // pred_fallthru
        _
    $region28: #{_conv_bn_relu_block.2} parent=5 // pred_fallthru
      _
    %p1462 = scmp.le.s32.totalorder 2, %s10
    // Predicated region
    $region45: #{_conv_bn_relu_block.2} parent=5 // pred_check
      %p1463 = pneg %p1462
    $region46: #{_conv_bn_relu_block.2} parent=5 // pred_check_branch
      %1465 = sbr.rel (%p1463) target = $region48
    $region47: #{_conv_bn_relu_block.2} parent=5 // pred_region
      %s1466 = ssub.s32 %s10, 2
      // Predicated region
      $region49: #{_conv_bn_relu_block.2} parent=47 // pred_check
        %p1467 = pneg %p111
      $region50: #{_conv_bn_relu_block.2} parent=47 // pred_check_branch
        %1469 = sbr.rel (%p1467) target = $region52
      $region51: #{_conv_bn_relu_block.2} parent=47 // pred_region
        %p1470 = scmp.lt.s32.totalorder %s23, 1
        %s1471 = scalar_select %p1470, %s23, 1
        %p1472 = scmp.lt.s32.totalorder %s24, 7
        %s1473 = scalar_select %p1472, %s24, 7
        %s1474 = smul.addr %s1473, 8
        %s1475 = smul.addr %s1471, 64
        %s1476 = sadd.s32 %s1474, %s1475
        %s1477 = smul.addr %s1476, 4
        %s1478 = scalar_lea.vmem %s2, %s1477
      $region52: #{_conv_bn_relu_block.2} parent=47 // pred_fallthru
        _
      // Predicated region
      $region53: #{_conv_bn_relu_block.2} parent=47 // pred_check
        %p1479 = pneg %p139
      $region54: #{_conv_bn_relu_block.2} parent=47 // pred_check_branch
        %1481 = sbr.rel (%p1479) target = $region56
      $region55: #{_conv_bn_relu_block.2} parent=47 // pred_region
        %p1482 = scmp.lt.s32.totalorder %s23, 1
        %s1483 = scalar_select %p1482, %s23, 1
        %p1484 = scmp.lt.s32.totalorder %s24, 7
        %s1485 = scalar_select %p1484, %s24, 7
        %s1486 = smul.addr %s1483, 8
        %s1487 = sadd.s32 %s1485, %s1486
        %s1488 = smul.addr %s1487, 8
        %s1489 = scalar_lea.vmem %s3, %s1488
      $region56: #{_conv_bn_relu_block.2} parent=47 // pred_fallthru
        _
    $region48: #{_conv_bn_relu_block.2} parent=5 // pred_fallthru
      _
  $region6: #{_conv_bn_relu_block.2} parent=0 // loop_footer
    %s14 = sadd.s32 1, %s10
  $region7: #{_conv_bn_relu_block.2} parent=0 // loop_footer_branch
    %9 = sbr.rel target = $region3
  $region8: #{_conv_bn_relu_block.2} parent=0 // loop_exit
    _

</llo_original>
